<compile_context>
chip_gen: v7x
topology: tpu7x:2x2x1
jax: 0.10.0
libtpu: 0.0.40
codegen_flags: <defaults>
</compile_context>

<pallas_src>
import jax
import jax.numpy as jnp
from jax.experimental import pallas as pl
from jax.experimental.pallas import tpu as pltpu

LRELU_SLOPE = 0.01          # F.leaky_relu default negative_slope
BN_EPS = 1e-5               # nn.BatchNorm2d default eps
MATMUL_DTYPE = jnp.float32  # set to jnp.bfloat16 on v6e/v7x to halve conv DMA bytes

_COMPILER_PARAMS = pltpu.CompilerParams(
    dimension_semantics=("parallel",),
    vmem_limit_bytes=32 * 1024 * 1024,
)


# ------------------------------ Pallas kernels ------------------------------

def _conv3x3_stats_kernel(x_ref, w_ref, y_ref, sum_ref, sumsq_ref):
    """Direct 3x3 'same' conv for one image + fused BN-stat partial sums.

    x_ref     : (1, H+2, (W+2)*Cin)    zero-padded input, lane dim merges (w, cin)
    w_ref     : (3, (W+2)*Cin, W*Cout) banded weights (one band per vertical tap ky)
    y_ref     : (1, H, W*Cout)         conv output, lane dim merges (w, cout)
    sum_ref   : (1, 1, W*Cout)         per-image column sums over the H rows
    sumsq_ref : (1, 1, W*Cout)         per-image column sums of squares
    """
    h = y_ref.shape[1]
    acc = jnp.dot(x_ref[0, 0:h, :], w_ref[0], preferred_element_type=jnp.float32)
    acc = acc + jnp.dot(x_ref[0, 1:h + 1, :], w_ref[1],
                        preferred_element_type=jnp.float32)
    acc = acc + jnp.dot(x_ref[0, 2:h + 2, :], w_ref[2],
                        preferred_element_type=jnp.float32)
    y_ref[0] = acc
    sum_ref[0] = jnp.sum(acc, axis=0, keepdims=True)
    sumsq_ref[0] = jnp.sum(acc * acc, axis=0, keepdims=True)


def _affine_lrelu_kernel(y_ref, sc_ref, sh_ref, o_ref):
    v = y_ref[...] * sc_ref[...] + sh_ref[...]
    o_ref[...] = jnp.where(v > 0, v, LRELU_SLOPE * v)


def _affine_add_lrelu_kernel(y_ref, sc_ref, sh_ref, r_ref, o_ref):
    v = y_ref[...] * sc_ref[...] + sh_ref[...] + r_ref[...]
    o_ref[...] = jnp.where(v > 0, v, LRELU_SLOPE * v)


# ------------------------------ Pallas wrappers ------------------------------

def _build_banded_weight(w_oihw, width):
    """(Cout, Cin, 3, 3) -> (3, (W+2)*Cin, W*Cout) banded matrix.

    band[ky][p*Cin + ci, w*Cout + co] = weight[co, ci, ky, p - w]  for 0 <= p-w <= 2.
    Row index p runs over the horizontally zero-padded width, so padding=1 is
    handled by the zeroed halo columns of the input slab.
    """
    cout, cin, kh, kw = w_oihw.shape
    assert (kh, kw) == (3, 3), "specialized to the 3x3 VGG configuration"
    wk = jnp.transpose(w_oihw, (2, 3, 1, 0))                 # (3, 3, Cin, Cout)
    p = jnp.arange(width + 2)[:, None]
    w = jnp.arange(width)[None, :]
    kx = p - w                                               # (W+2, W)
    valid = (kx >= 0) & (kx <= 2)
    gathered = wk[:, jnp.clip(kx, 0, 2)]                     # (3, W+2, W, Cin, Cout)
    gathered = jnp.where(valid[None, :, :, None, None], gathered, 0.0)
    banded = jnp.transpose(gathered, (0, 1, 3, 2, 4))        # (3, W+2, Cin, W, Cout)
    return banded.reshape(3, (width + 2) * cin, width * cout)


def conv3x3_same_with_stats(x_nhwc, w_oihw):
    """3x3 / stride 1 / pad 1 / dilation 1 / bias-free conv + fused BN partials."""
    n, h, w, cin = x_nhwc.shape
    cout = w_oihw.shape[0]
    xp = jnp.pad(x_nhwc, ((0, 0), (1, 1), (1, 1), (0, 0)))
    xp = xp.reshape(n, h + 2, (w + 2) * cin).astype(MATMUL_DTYPE)
    banded = _build_banded_weight(w_oihw, w).astype(MATMUL_DTYPE)

    y, col_sum, col_sumsq = pl.pallas_call(
        _conv3x3_stats_kernel,
        out_shape=(jax.ShapeDtypeStruct((n, h, w * cout), jnp.float32),
                   jax.ShapeDtypeStruct((n, 1, w * cout), jnp.float32),
                   jax.ShapeDtypeStruct((n, 1, w * cout), jnp.float32)),
        grid=(n,),
        in_specs=[pl.BlockSpec((1, h + 2, (w + 2) * cin), lambda i: (i, 0, 0)),
                  pl.BlockSpec((3, (w + 2) * cin, w * cout), lambda i: (0, 0, 0))],
        out_specs=(pl.BlockSpec((1, h, w * cout), lambda i: (i, 0, 0)),
                   pl.BlockSpec((1, 1, w * cout), lambda i: (i, 0, 0)),
                   pl.BlockSpec((1, 1, w * cout), lambda i: (i, 0, 0))),
        compiler_params=_COMPILER_PARAMS,
    )(xp, banded)
    return y, col_sum, col_sumsq


def _bn_scale_shift(col_sum, col_sumsq, gamma, beta, count, width):
    """Tiny reduction: per-image column partial sums -> lane-tiled scale/shift rows."""
    c = gamma.shape[0]
    s = col_sum.sum(axis=(0, 1)).reshape(width, c).sum(axis=0)      # (C,)
    sq = col_sumsq.sum(axis=(0, 1)).reshape(width, c).sum(axis=0)   # (C,)
    mean = s / count
    var = jnp.maximum(sq / count - mean * mean, 0.0)   # biased (training-mode BN)
    scale = gamma * jax.lax.rsqrt(var + BN_EPS)
    shift = beta - mean * scale
    scale_row = jnp.tile(scale, width).reshape(1, width * c)
    shift_row = jnp.tile(shift, width).reshape(1, width * c)
    return scale_row, shift_row


def _affine_lrelu(y_rows, scale_row, shift_row, residual_rows=None):
    """Tiled, lane-dense BN-apply (+ optional residual) + leaky_relu on (rows, W*C)."""
    rows, lanes = y_rows.shape
    tr = rows if rows <= 512 else 512
    row_spec = pl.BlockSpec((tr, lanes), lambda i: (i, 0))
    vec_spec = pl.BlockSpec((1, lanes), lambda i: (0, 0))
    if residual_rows is None:
        kernel = _affine_lrelu_kernel
        operands = (y_rows, scale_row, shift_row)
        in_specs = [row_spec, vec_spec, vec_spec]
    else:
        kernel = _affine_add_lrelu_kernel
        operands = (y_rows, scale_row, shift_row, residual_rows)
        in_specs = [row_spec, vec_spec, vec_spec, row_spec]
    return pl.pallas_call(
        kernel,
        out_shape=jax.ShapeDtypeStruct((rows, lanes), jnp.float32),
        grid=(pl.cdiv(rows, tr),),
        in_specs=in_specs,
        out_specs=row_spec,
        compiler_params=_COMPILER_PARAMS,
    )(*operands)


# ------------------------------- Forward pass --------------------------------

def bn_residual_block_forward(params, x_nchw):
    n, c, h, w = x_nchw.shape
    f = params['conv0_w'].shape[0]
    assert c == f, "residual add requires in_channels == num_filters"

    x = jnp.transpose(x_nchw, (0, 2, 3, 1)).astype(jnp.float32)   # NCHW -> NHWC
    x_rows = x.reshape(n * h, w * c)                              # lane-dense view
    count = n * h * w

    # conv_0 -> bn_0 (batch stats) -> leaky_relu
    y0, s0, sq0 = conv3x3_same_with_stats(x, params['conv0_w'])
    sc0, sh0 = _bn_scale_shift(s0, sq0, params['bn0_g'], params['bn0_b'], count, w)
    a0 = _affine_lrelu(y0.reshape(n * h, w * f), sc0, sh0)

    # conv_1 -> bn_1 (batch stats) -> +x -> leaky_relu
    y1, s1, sq1 = conv3x3_same_with_stats(a0.reshape(n, h, w, f), params['conv1_w'])
    sc1, sh1 = _bn_scale_shift(s1, sq1, params['bn1_g'], params['bn1_b'], count, w)
    out = _affine_lrelu(y1.reshape(n * h, w * f), sc1, sh1, residual_rows=x_rows)

    return jnp.transpose(out.reshape(n, h, w, f), (0, 3, 1, 2))   # back to NCHW


# --------------------------- Pure-JAX reference -------------------------------

def reference_forward(params, x_nchw):
    dn = ('NCHW', 'OIHW', 'NCHW')

    def conv(v, wgt):
        return jax.lax.conv_general_dilated(
            v, wgt, window_strides=(1, 1), padding=((1, 1), (1, 1)),
            dimension_numbers=dn, precision=jax.lax.Precision.HIGHEST)

    def bn(v, g, b):
        mean = v.mean(axis=(0, 2, 3), keepdims=True)
        var = ((v - mean) ** 2).mean(axis=(0, 2, 3), keepdims=True)
        return ((v - mean) * jax.lax.rsqrt(var + BN_EPS)
                * g.reshape(1, -1, 1, 1) + b.reshape(1, -1, 1, 1))

    def lrelu(v):
        return jnp.where(v > 0, v, LRELU_SLOPE * v)

    out = lrelu(bn(conv(x_nchw, params['conv0_w']), params['bn0_g'], params['bn0_b']))
    out = bn(conv(out, params['conv1_w']), params['bn1_g'], params['bn1_b'])
    return lrelu(x_nchw + out)


# ----------------------------------- Main -------------------------------------

if __name__ == "__main__":
    key = jax.random.PRNGKey(0)
    k_x, k_w0, k_w1 = jax.random.split(key, 3)

    # BNResidualBlock(input_shape=(2,16,16,16), num_filters=16, kernel_size=3,
    #                 padding=1, bias=False, dilation=1)
    N, C, H, W = 2, 16, 16, 16
    F = 16
    x = jax.random.normal(k_x, (N, C, H, W), jnp.float32)
    params = {
        'conv0_w': jax.random.normal(k_w0, (F, C, 3, 3), jnp.float32) / jnp.sqrt(9.0 * C),
        'bn0_g': jnp.ones((F,), jnp.float32), 'bn0_b': jnp.zeros((F,), jnp.float32),
        'conv1_w': jax.random.normal(k_w1, (F, F, 3, 3), jnp.float32) / jnp.sqrt(9.0 * F),
        'bn1_g': jnp.ones((F,), jnp.float32), 'bn1_b': jnp.zeros((F,), jnp.float32),
    }

    fwd = jax.jit(bn_residual_block_forward)
    out = fwd(params, x)
    jax.block_until_ready(out)
    assert out.shape == (N, F, H, W) and out.dtype == jnp.float32

    ref = jax.jit(reference_forward)(params, x)
    err = float(jnp.max(jnp.abs(out - ref)))
    assert err < 3e-2, f"max abs diff vs reference too large: {err}"

    print("KERNEL_OK")
</pallas_src>

<mosaic_0001>
module attributes {stable_mosaic.version = 11 : i64} {
  func.func @_conv3x3_stats_kernel(%arg0: i32, %arg1: memref<1x18x288xf32, #tpu.memory_space<vmem>>, %arg2: memref<3x288x256xf32, #tpu.memory_space<vmem>>, %arg3: memref<1x16x256xf32, #tpu.memory_space<vmem>>, %arg4: memref<1x1x256xf32, #tpu.memory_space<vmem>>, %arg5: memref<1x1x256xf32, #tpu.memory_space<vmem>>) attributes {dimension_semantics = [#tpu.dimension_semantics<parallel>], iteration_bounds = array<i64: 2>, scalar_prefetch = 0 : i64, scratch_operands = 0 : i64, tpu.core_type = #tpu.core_type<tc>, window_params = [{transform_indices = @transform_0, window_bounds = array<i64: 1, 18, 288>}, {pipeline_mode = #tpu.pipeline_mode<synchronous>, transform_indices = @transform_1, window_bounds = array<i64: 3, 288, 256>}, {transform_indices = @transform_2, window_bounds = array<i64: 1, 16, 256>}, {transform_indices = @transform_3, window_bounds = array<i64: 1, 1, 256>}, {transform_indices = @transform_4, window_bounds = array<i64: 1, 1, 256>}]} {
    %c0 = arith.constant 0 : index
    %c0_0 = arith.constant 0 : index
    %c0_1 = arith.constant 0 : index
    %0 = vector.load %arg1[%c0, %c0_0, %c0_1] : memref<1x18x288xf32, #tpu.memory_space<vmem>>, vector<1x16x288xf32>
    %1 = vector.shape_cast %0 : vector<1x16x288xf32> to vector<16x288xf32>
    %c0_2 = arith.constant 0 : index
    %c0_3 = arith.constant 0 : index
    %c0_4 = arith.constant 0 : index
    %2 = vector.load %arg2[%c0_2, %c0_3, %c0_4] : memref<3x288x256xf32, #tpu.memory_space<vmem>>, vector<1x288x256xf32>
    %3 = vector.shape_cast %2 : vector<1x288x256xf32> to vector<288x256xf32>
    %cst = arith.constant dense<0.000000e+00> : vector<16x256xf32>
    %4 = tpu.matmul %1, %3, %cst {dimension_numbers = #tpu.dot_dimension_numbers<[1], [0], [0], [1], [0, 0, 1, 1], [], []>} : vector<16x288xf32>, vector<288x256xf32>, vector<16x256xf32> -> vector<16x256xf32>
    %c0_5 = arith.constant 0 : index
    %c1 = arith.constant 1 : index
    %c0_6 = arith.constant 0 : index
    %5 = vector.load %arg1[%c0_5, %c1, %c0_6] : memref<1x18x288xf32, #tpu.memory_space<vmem>>, vector<1x16x288xf32>
    %6 = vector.shape_cast %5 : vector<1x16x288xf32> to vector<16x288xf32>
    %c1_7 = arith.constant 1 : index
    %c0_8 = arith.constant 0 : index
    %c0_9 = arith.constant 0 : index
    %7 = vector.load %arg2[%c1_7, %c0_8, %c0_9] : memref<3x288x256xf32, #tpu.memory_space<vmem>>, vector<1x288x256xf32>
    %8 = vector.shape_cast %7 : vector<1x288x256xf32> to vector<288x256xf32>
    %cst_10 = arith.constant dense<0.000000e+00> : vector<16x256xf32>
    %9 = tpu.matmul %6, %8, %cst_10 {dimension_numbers = #tpu.dot_dimension_numbers<[1], [0], [0], [1], [0, 0, 1, 1], [], []>} : vector<16x288xf32>, vector<288x256xf32>, vector<16x256xf32> -> vector<16x256xf32>
    %10 = arith.addf %4, %9 : vector<16x256xf32>
    %c0_11 = arith.constant 0 : index
    %c2 = arith.constant 2 : index
    %c0_12 = arith.constant 0 : index
    %11 = vector.load %arg1[%c0_11, %c2, %c0_12] : memref<1x18x288xf32, #tpu.memory_space<vmem>>, vector<1x16x288xf32>
    %12 = vector.shape_cast %11 : vector<1x16x288xf32> to vector<16x288xf32>
    %c2_13 = arith.constant 2 : index
    %c0_14 = arith.constant 0 : index
    %c0_15 = arith.constant 0 : index
    %13 = vector.load %arg2[%c2_13, %c0_14, %c0_15] : memref<3x288x256xf32, #tpu.memory_space<vmem>>, vector<1x288x256xf32>
    %14 = vector.shape_cast %13 : vector<1x288x256xf32> to vector<288x256xf32>
    %cst_16 = arith.constant dense<0.000000e+00> : vector<16x256xf32>
    %15 = tpu.matmul %12, %14, %cst_16 {dimension_numbers = #tpu.dot_dimension_numbers<[1], [0], [0], [1], [0, 0, 1, 1], [], []>} : vector<16x288xf32>, vector<288x256xf32>, vector<16x256xf32> -> vector<16x256xf32>
    %16 = arith.addf %10, %15 : vector<16x256xf32>
    %c0_17 = arith.constant 0 : index
    %c0_18 = arith.constant 0 : index
    %c0_19 = arith.constant 0 : index
    %17 = vector.load %arg3[%c0_17, %c0_18, %c0_19] : memref<1x16x256xf32, #tpu.memory_space<vmem>>, vector<1x16x256xf32>
    %18 = vector.shape_cast %17 : vector<1x16x256xf32> to vector<16x256xf32>
    %19 = vector.shape_cast %16 : vector<16x256xf32> to vector<1x16x256xf32>
    tpu.vector_store %arg3[%c0_17, %c0_18, %c0_19], %19 {strides = array<i32>} : memref<1x16x256xf32, #tpu.memory_space<vmem>>, vector<1x16x256xf32>,
    %cst_20 = arith.constant dense<0.000000e+00> : vector<256xf32>
    %20 = vector.multi_reduction <add>, %16, %cst_20 [0] : vector<16x256xf32> to vector<256xf32>
    %21 = vector.shape_cast %20 : vector<256xf32> to vector<1x256xf32>
    %c0_21 = arith.constant 0 : index
    %c0_22 = arith.constant 0 : index
    %c0_23 = arith.constant 0 : index
    %22 = vector.load %arg4[%c0_21, %c0_22, %c0_23] : memref<1x1x256xf32, #tpu.memory_space<vmem>>, vector<1x1x256xf32>
    %23 = vector.shape_cast %22 : vector<1x1x256xf32> to vector<1x256xf32>
    %24 = vector.shape_cast %21 : vector<1x256xf32> to vector<1x1x256xf32>
    tpu.vector_store %arg4[%c0_21, %c0_22, %c0_23], %24 {strides = array<i32>} : memref<1x1x256xf32, #tpu.memory_space<vmem>>, vector<1x1x256xf32>,
    %25 = arith.mulf %16, %16 : vector<16x256xf32>
    %cst_24 = arith.constant dense<0.000000e+00> : vector<256xf32>
    %26 = vector.multi_reduction <add>, %25, %cst_24 [0] : vector<16x256xf32> to vector<256xf32>
    %27 = vector.shape_cast %26 : vector<256xf32> to vector<1x256xf32>
    %c0_25 = arith.constant 0 : index
    %c0_26 = arith.constant 0 : index
    %c0_27 = arith.constant 0 : index
    %28 = vector.load %arg5[%c0_25, %c0_26, %c0_27] : memref<1x1x256xf32, #tpu.memory_space<vmem>>, vector<1x1x256xf32>
    %29 = vector.shape_cast %28 : vector<1x1x256xf32> to vector<1x256xf32>
    %30 = vector.shape_cast %27 : vector<1x256xf32> to vector<1x1x256xf32>
    tpu.vector_store %arg5[%c0_25, %c0_26, %c0_27], %30 {strides = array<i32>} : memref<1x1x256xf32, #tpu.memory_space<vmem>>, vector<1x1x256xf32>,
    return
  }
  func.func @transform_0(%arg0: i32) -> (i32, i32, i32) {
    %c0_i32 = arith.constant 0 : i32
    %c0_i32_0 = arith.constant 0 : i32
    %c0_i32_1 = arith.constant 0 : i32
    return %arg0, %c0_i32, %c0_i32_0 : i32, i32, i32
  }
  func.func @transform_1(%arg0: i32) -> (i32, i32, i32) {
    %c0_i32 = arith.constant 0 : i32
    %c0_i32_0 = arith.constant 0 : i32
    %c0_i32_1 = arith.constant 0 : i32
    %c0_i32_2 = arith.constant 0 : i32
    return %c0_i32, %c0_i32_0, %c0_i32_1 : i32, i32, i32
  }
  func.func @transform_2(%arg0: i32) -> (i32, i32, i32) {
    %c0_i32 = arith.constant 0 : i32
    %c0_i32_0 = arith.constant 0 : i32
    %c0_i32_1 = arith.constant 0 : i32
    return %arg0, %c0_i32, %c0_i32_0 : i32, i32, i32
  }
  func.func @transform_3(%arg0: i32) -> (i32, i32, i32) {
    %c0_i32 = arith.constant 0 : i32
    %c0_i32_0 = arith.constant 0 : i32
    %c0_i32_1 = arith.constant 0 : i32
    return %arg0, %c0_i32, %c0_i32_0 : i32, i32, i32
  }
  func.func @transform_4(%arg0: i32) -> (i32, i32, i32) {
    %c0_i32 = arith.constant 0 : i32
    %c0_i32_0 = arith.constant 0 : i32
    %c0_i32_1 = arith.constant 0 : i32
    return %arg0, %c0_i32, %c0_i32_0 : i32, i32, i32
  }
}

module attributes {stable_mosaic.version = 11 : i64} {
  func.func @_affine_lrelu_kernel(%arg0: i32, %arg1: memref<32x256xf32, #tpu.memory_space<vmem>>, %arg2: memref<1x256xf32, #tpu.memory_space<vmem>>, %arg3: memref<1x256xf32, #tpu.memory_space<vmem>>, %arg4: memref<32x256xf32, #tpu.memory_space<vmem>>) attributes {dimension_semantics = [#tpu.dimension_semantics<parallel>], iteration_bounds = array<i64: 1>, scalar_prefetch = 0 : i64, scratch_operands = 0 : i64, tpu.core_type = #tpu.core_type<tc>, window_params = [{transform_indices = @transform_0, window_bounds = array<i64: 32, 256>}, {pipeline_mode = #tpu.pipeline_mode<synchronous>, transform_indices = @transform_1, window_bounds = array<i64: 1, 256>}, {pipeline_mode = #tpu.pipeline_mode<synchronous>, transform_indices = @transform_2, window_bounds = array<i64: 1, 256>}, {transform_indices = @transform_3, window_bounds = array<i64: 32, 256>}]} {
    %c0 = arith.constant 0 : index
    %c0_0 = arith.constant 0 : index
    %0 = vector.load %arg1[%c0, %c0_0] : memref<32x256xf32, #tpu.memory_space<vmem>>, vector<32x256xf32>
    %c0_1 = arith.constant 0 : index
    %c0_2 = arith.constant 0 : index
    %1 = vector.load %arg2[%c0_1, %c0_2] : memref<1x256xf32, #tpu.memory_space<vmem>>, vector<1x256xf32>
    %2 = vector.broadcast %1 : vector<1x256xf32> to vector<32x256xf32>
    %3 = arith.mulf %0, %2 : vector<32x256xf32>
    %c0_3 = arith.constant 0 : index
    %c0_4 = arith.constant 0 : index
    %4 = vector.load %arg3[%c0_3, %c0_4] : memref<1x256xf32, #tpu.memory_space<vmem>>, vector<1x256xf32>
    %5 = vector.broadcast %4 : vector<1x256xf32> to vector<32x256xf32>
    %6 = arith.addf %3, %5 : vector<32x256xf32>
    %cst = arith.constant 0.000000e+00 : f32
    %7 = vector.broadcast %cst : f32 to vector<32x256xf32>
    %8 = arith.cmpf ogt, %6, %7 : vector<32x256xf32>
    %cst_5 = arith.constant 0.00999999977 : f32
    %9 = vector.broadcast %cst_5 : f32 to vector<32x256xf32>
    %10 = arith.mulf %9, %6 : vector<32x256xf32>
    %11 = arith.select %8, %6, %10 : vector<32x256xi1>, vector<32x256xf32>
    %c0_6 = arith.constant 0 : index
    %c0_7 = arith.constant 0 : index
    %12 = vector.load %arg4[%c0_6, %c0_7] : memref<32x256xf32, #tpu.memory_space<vmem>>, vector<32x256xf32>
    tpu.vector_store %arg4[%c0_6, %c0_7], %11 {strides = array<i32>} : memref<32x256xf32, #tpu.memory_space<vmem>>, vector<32x256xf32>,
    return
  }
  func.func @transform_0(%arg0: i32) -> (i32, i32) {
    %c0_i32 = arith.constant 0 : i32
    %c0_i32_0 = arith.constant 0 : i32
    return %arg0, %c0_i32 : i32, i32
  }
  func.func @transform_1(%arg0: i32) -> (i32, i32) {
    %c0_i32 = arith.constant 0 : i32
    %c0_i32_0 = arith.constant 0 : i32
    %c0_i32_1 = arith.constant 0 : i32
    return %c0_i32, %c0_i32_0 : i32, i32
  }
  func.func @transform_2(%arg0: i32) -> (i32, i32) {
    %c0_i32 = arith.constant 0 : i32
    %c0_i32_0 = arith.constant 0 : i32
    %c0_i32_1 = arith.constant 0 : i32
    return %c0_i32, %c0_i32_0 : i32, i32
  }
  func.func @transform_3(%arg0: i32) -> (i32, i32) {
    %c0_i32 = arith.constant 0 : i32
    %c0_i32_0 = arith.constant 0 : i32
    return %arg0, %c0_i32 : i32, i32
  }
}

module attributes {stable_mosaic.version = 11 : i64} {
  func.func @_affine_add_lrelu_kernel(%arg0: i32, %arg1: memref<32x256xf32, #tpu.memory_space<vmem>>, %arg2: memref<1x256xf32, #tpu.memory_space<vmem>>, %arg3: memref<1x256xf32, #tpu.memory_space<vmem>>, %arg4: memref<32x256xf32, #tpu.memory_space<vmem>>, %arg5: memref<32x256xf32, #tpu.memory_space<vmem>>) attributes {dimension_semantics = [#tpu.dimension_semantics<parallel>], iteration_bounds = array<i64: 1>, scalar_prefetch = 0 : i64, scratch_operands = 0 : i64, tpu.core_type = #tpu.core_type<tc>, window_params = [{transform_indices = @transform_0, window_bounds = array<i64: 32, 256>}, {pipeline_mode = #tpu.pipeline_mode<synchronous>, transform_indices = @transform_1, window_bounds = array<i64: 1, 256>}, {pipeline_mode = #tpu.pipeline_mode<synchronous>, transform_indices = @transform_2, window_bounds = array<i64: 1, 256>}, {transform_indices = @transform_3, window_bounds = array<i64: 32, 256>}, {transform_indices = @transform_4, window_bounds = array<i64: 32, 256>}]} {
    %c0 = arith.constant 0 : index
    %c0_0 = arith.constant 0 : index
    %0 = vector.load %arg1[%c0, %c0_0] : memref<32x256xf32, #tpu.memory_space<vmem>>, vector<32x256xf32>
    %c0_1 = arith.constant 0 : index
    %c0_2 = arith.constant 0 : index
    %1 = vector.load %arg2[%c0_1, %c0_2] : memref<1x256xf32, #tpu.memory_space<vmem>>, vector<1x256xf32>
    %2 = vector.broadcast %1 : vector<1x256xf32> to vector<32x256xf32>
    %3 = arith.mulf %0, %2 : vector<32x256xf32>
    %c0_3 = arith.constant 0 : index
    %c0_4 = arith.constant 0 : index
    %4 = vector.load %arg3[%c0_3, %c0_4] : memref<1x256xf32, #tpu.memory_space<vmem>>, vector<1x256xf32>
    %5 = vector.broadcast %4 : vector<1x256xf32> to vector<32x256xf32>
    %6 = arith.addf %3, %5 : vector<32x256xf32>
    %c0_5 = arith.constant 0 : index
    %c0_6 = arith.constant 0 : index
    %7 = vector.load %arg4[%c0_5, %c0_6] : memref<32x256xf32, #tpu.memory_space<vmem>>, vector<32x256xf32>
    %8 = arith.addf %6, %7 : vector<32x256xf32>
    %cst = arith.constant 0.000000e+00 : f32
    %9 = vector.broadcast %cst : f32 to vector<32x256xf32>
    %10 = arith.cmpf ogt, %8, %9 : vector<32x256xf32>
    %cst_7 = arith.constant 0.00999999977 : f32
    %11 = vector.broadcast %cst_7 : f32 to vector<32x256xf32>
    %12 = arith.mulf %11, %8 : vector<32x256xf32>
    %13 = arith.select %10, %8, %12 : vector<32x256xi1>, vector<32x256xf32>
    %c0_8 = arith.constant 0 : index
    %c0_9 = arith.constant 0 : index
    %14 = vector.load %arg5[%c0_8, %c0_9] : memref<32x256xf32, #tpu.memory_space<vmem>>, vector<32x256xf32>
    tpu.vector_store %arg5[%c0_8, %c0_9], %13 {strides = array<i32>} : memref<32x256xf32, #tpu.memory_space<vmem>>, vector<32x256xf32>,
    return
  }
  func.func @transform_0(%arg0: i32) -> (i32, i32) {
    %c0_i32 = arith.constant 0 : i32
    %c0_i32_0 = arith.constant 0 : i32
    return %arg0, %c0_i32 : i32, i32
  }
  func.func @transform_1(%arg0: i32) -> (i32, i32) {
    %c0_i32 = arith.constant 0 : i32
    %c0_i32_0 = arith.constant 0 : i32
    %c0_i32_1 = arith.constant 0 : i32
    return %c0_i32, %c0_i32_0 : i32, i32
  }
  func.func @transform_2(%arg0: i32) -> (i32, i32) {
    %c0_i32 = arith.constant 0 : i32
    %c0_i32_0 = arith.constant 0 : i32
    %c0_i32_1 = arith.constant 0 : i32
    return %c0_i32, %c0_i32_0 : i32, i32
  }
  func.func @transform_3(%arg0: i32) -> (i32, i32) {
    %c0_i32 = arith.constant 0 : i32
    %c0_i32_0 = arith.constant 0 : i32
    return %arg0, %c0_i32 : i32, i32
  }
  func.func @transform_4(%arg0: i32) -> (i32, i32) {
    %c0_i32 = arith.constant 0 : i32
    %c0_i32_0 = arith.constant 0 : i32
    return %arg0, %c0_i32 : i32, i32
  }
}

</mosaic_0001>

<llo_original>
// kernel: bn_residual_block_forward.4
$region0: #{bn_residual_block_forward.4}
  #allocation0 [shape = 'u32[]', space=smem, size = 0x4, offset = 0x4, fixed_abs, tag = 'smem constant byte address 0x4 - core index']
  #allocation1 [shape = 'u32[144,128]{1,0:T(1,128)}', space=vmem, size = 0x12000, scoped, tag = 'internal scratch']
  %s0 = inlined_call_operand.vmem [shape: f32[2,18,288], index: 0, kind: input, shape index: {}]
  %s1 = inlined_call_operand.vmem [shape: f32[3,288,256], index: 1, kind: input, shape index: {}]
  %s2 = inlined_call_operand.vmem [shape: f32[2,16,256], index: 2, kind: output, shape index: {0}]
  %s3 = inlined_call_operand.vmem [shape: f32[2,1,256], index: 3, kind: output, shape index: {1}]
  %s4 = inlined_call_operand.vmem [shape: f32[2,1,256], index: 4, kind: output, shape index: {2}]
  %5 = xla_tuple %s2, %s3, %s4
  %s6 = sld [smem:[#allocation0]]
  $region57: #{bn_residual_block_forward.4} parent=0
    _
  %s8 = ssub.s32 1, %s6
  %s9 = scalar_select 0, %s8, %s6
  loop: start=0, step=1, limit=4
  $region2: #{bn_residual_block_forward.4} parent=0 // loop_pre_header
    _
  $region3: #{bn_residual_block_forward.4} parent=0 // loop_header
    %s11 = sphi 0, %s15
    %p12 = scmp.ge.s32.totalorder %s11, 4
    %s21 = sphi 0, %s23
    %s24 = sphi 0, %s21
    %s25 = sphi 0, %s24
    %s41 = sphi 0, %s25
    %s45 = sphi 0, %s45
    %s47 = sphi 0, %s45
    %s48 = sphi 0, %s47
    %s62 = sphi 0, %s48
    %s68 = sphi 0, %s70
    %s71 = sphi 0, %s68
    %s72 = sphi 0, %s71
    %s88 = sphi 0, %s72
    %s94 = sphi 0, %s96
    %s97 = sphi 0, %s94
    %s98 = sphi 0, %s97
    %s114 = sphi 0, %s98
    %s120 = sphi 0, %s122
    %s123 = sphi 0, %s120
    %s124 = sphi 0, %s123
    %s140 = sphi 0, %s124
  $region4: #{bn_residual_block_forward.4} parent=0 // loop_header_branch
    %14 = sbr.rel (%p12) target = $region8
  $region5: #{bn_residual_block_forward.4} parent=0 // loop_body
    %s16 = ssub.s32 %s11, 1
    %s17 = ssub.s32 %s11, 2
    %s18 = sadd.s32 %s11, 1
    %s19 = ssub.s32 %s11, %s18
    %p20 = scmp.eq.s32.totalorder %s19, 0
    %s22 = sadd.s32 %s21, 1
    %s23 = scalar_select %p20, %s21, %s22
    %p26 = pneg %p20
    %p27 = scmp.eq.s32.totalorder %s11, 1
    %p28 = por %p26, %p27
    %p29 = scmp.ne.s32.totalorder %s21, %s24
    %p30 = scmp.eq.s32.totalorder %s11, 0
    %p31 = por %p29, %p30
    %p32 = scmp.ne.s32.totalorder %s21, %s24
    %p33 = scmp.eq.s32.totalorder %s16, 1
    %p34 = por %p32, %p33
    %p35 = scmp.ne.s32.totalorder %s24, %s25
    %p36 = scmp.eq.s32.totalorder %s16, 0
    %p37 = por %p35, %p36
    %p38 = scmp.ne.s32.totalorder %s24, %s25
    %p39 = scmp.eq.s32.totalorder %s17, 1
    %p40 = por %p38, %p39
    %p42 = scmp.ne.s32.totalorder %s25, %s41
    %p43 = scmp.eq.s32.totalorder %s17, 0
    %p44 = por %p42, %p43
    %s46 = sadd.s32 %s45, 1
    %p49 = scmp.eq.s32.totalorder %s11, 1
    %p50 = scmp.ne.s32.totalorder %s45, %s47
    %p51 = scmp.eq.s32.totalorder %s11, 0
    %p52 = por %p50, %p51
    %p53 = scmp.ne.s32.totalorder %s45, %s47
    %p54 = scmp.eq.s32.totalorder %s16, 1
    %p55 = por %p53, %p54
    %p56 = scmp.ne.s32.totalorder %s47, %s48
    %p57 = scmp.eq.s32.totalorder %s16, 0
    %p58 = por %p56, %p57
    %p59 = scmp.ne.s32.totalorder %s47, %s48
    %p60 = scmp.eq.s32.totalorder %s17, 1
    %p61 = por %p59, %p60
    %p63 = scmp.ne.s32.totalorder %s48, %s62
    %p64 = scmp.eq.s32.totalorder %s17, 0
    %p65 = por %p63, %p64
    %s66 = ssub.s32 %s11, %s18
    %p67 = scmp.eq.s32.totalorder %s66, 0
    %s69 = sadd.s32 %s68, 1
    %s70 = scalar_select %p67, %s68, %s69
    %p73 = pneg %p67
    %p74 = scmp.eq.s32.totalorder %s11, 1
    %p75 = por %p73, %p74
    %p76 = scmp.ne.s32.totalorder %s68, %s71
    %p77 = scmp.eq.s32.totalorder %s11, 0
    %p78 = por %p76, %p77
    %p79 = scmp.ne.s32.totalorder %s68, %s71
    %p80 = scmp.eq.s32.totalorder %s16, 1
    %p81 = por %p79, %p80
    %p82 = scmp.ne.s32.totalorder %s71, %s72
    %p83 = scmp.eq.s32.totalorder %s16, 0
    %p84 = por %p82, %p83
    %p85 = scmp.ne.s32.totalorder %s71, %s72
    %p86 = scmp.eq.s32.totalorder %s17, 1
    %p87 = por %p85, %p86
    %p89 = scmp.ne.s32.totalorder %s72, %s88
    %p90 = scmp.eq.s32.totalorder %s17, 0
    %p91 = por %p89, %p90
    %s92 = ssub.s32 %s11, %s18
    %p93 = scmp.eq.s32.totalorder %s92, 0
    %s95 = sadd.s32 %s94, 1
    %s96 = scalar_select %p93, %s94, %s95
    %p99 = pneg %p93
    %p100 = scmp.eq.s32.totalorder %s11, 1
    %p101 = por %p99, %p100
    %p102 = scmp.ne.s32.totalorder %s94, %s97
    %p103 = scmp.eq.s32.totalorder %s11, 0
    %p104 = por %p102, %p103
    %p105 = scmp.ne.s32.totalorder %s94, %s97
    %p106 = scmp.eq.s32.totalorder %s16, 1
    %p107 = por %p105, %p106
    %p108 = scmp.ne.s32.totalorder %s97, %s98
    %p109 = scmp.eq.s32.totalorder %s16, 0
    %p110 = por %p108, %p109
    %p111 = scmp.ne.s32.totalorder %s97, %s98
    %p112 = scmp.eq.s32.totalorder %s17, 1
    %p113 = por %p111, %p112
    %p115 = scmp.ne.s32.totalorder %s98, %s114
    %p116 = scmp.eq.s32.totalorder %s17, 0
    %p117 = por %p115, %p116
    %s118 = ssub.s32 %s11, %s18
    %p119 = scmp.eq.s32.totalorder %s118, 0
    %s121 = sadd.s32 %s120, 1
    %s122 = scalar_select %p119, %s120, %s121
    %p125 = pneg %p119
    %p126 = scmp.eq.s32.totalorder %s11, 1
    %p127 = por %p125, %p126
    %p128 = scmp.ne.s32.totalorder %s120, %s123
    %p129 = scmp.eq.s32.totalorder %s11, 0
    %p130 = por %p128, %p129
    %p131 = scmp.ne.s32.totalorder %s120, %s123
    %p132 = scmp.eq.s32.totalorder %s16, 1
    %p133 = por %p131, %p132
    %p134 = scmp.ne.s32.totalorder %s123, %s124
    %p135 = scmp.eq.s32.totalorder %s16, 0
    %p136 = por %p134, %p135
    %p137 = scmp.ne.s32.totalorder %s123, %s124
    %p138 = scmp.eq.s32.totalorder %s17, 1
    %p139 = por %p137, %p138
    %p141 = scmp.ne.s32.totalorder %s124, %s140
    %p142 = scmp.eq.s32.totalorder %s17, 0
    %p143 = por %p141, %p142
    %p144 = scmp.le.s32.totalorder 1, %s11
    %p145 = scmp.lt.s32.totalorder %s11, 3
    %p146 = pnand %p144, %p145
    %p147 = pneg %p146
    // Predicated region
    $region9: #{bn_residual_block_forward.4} parent=5 // pred_check
      _
    $region10: #{bn_residual_block_forward.4} parent=5 // pred_check_branch
      %149 = sbr.rel (%p146) target = $region12
    $region11: #{bn_residual_block_forward.4} parent=5 // pred_region
      %s150 = ssub.s32 %s11, 1
      // Predicated region
      $region13: #{bn_residual_block_forward.4} parent=11 // pred_check
        %p151 = pneg %p58
      $region14: #{bn_residual_block_forward.4} parent=11 // pred_check_branch
        %153 = sbr.rel (%p151) target = $region16
      $region15: #{bn_residual_block_forward.4} parent=11 // pred_region
        _
      $region16: #{bn_residual_block_forward.4} parent=11 // pred_fallthru
        _
    $region12: #{bn_residual_block_forward.4} parent=5 // pred_fallthru
      _
    %p154 = scmp.lt.s32.totalorder %s11, 2
    // Predicated region
    $region17: #{bn_residual_block_forward.4} parent=5 // pred_check
      %p155 = pneg %p154
    $region18: #{bn_residual_block_forward.4} parent=5 // pred_check_branch
      %157 = sbr.rel (%p155) target = $region20
    $region19: #{bn_residual_block_forward.4} parent=5 // pred_region
      // Predicated region
      $region21: #{bn_residual_block_forward.4} parent=19 // pred_check
        %p158 = pneg %p31
      $region22: #{bn_residual_block_forward.4} parent=19 // pred_check_branch
        %160 = sbr.rel (%p158) target = $region24
      $region23: #{bn_residual_block_forward.4} parent=19 // pred_region
        %p161 = scmp.lt.s32.totalorder %s11, 1
        %s162 = scalar_select %p161, %s11, 1
        %s163 = smul.addr %s162, 9
        %s164 = smul.addr %s163, 8
        %s165 = scalar_lea.vmem %s0, %s164
      $region24: #{bn_residual_block_forward.4} parent=19 // pred_fallthru
        _
    $region20: #{bn_residual_block_forward.4} parent=5 // pred_fallthru
      _
    %p166 = scmp.le.s32.totalorder 1, %s11
    %p167 = scmp.lt.s32.totalorder %s11, 3
    %p168 = pnand %p166, %p167
    %p169 = pneg %p168
    // Predicated region
    $region25: #{bn_residual_block_forward.4} parent=5 // pred_check
      _
    $region26: #{bn_residual_block_forward.4} parent=5 // pred_check_branch
      %171 = sbr.rel (%p168) target = $region28
    $region27: #{bn_residual_block_forward.4} parent=5 // pred_region
      %s172 = ssub.s32 %s11, 1
      %p173 = scmp.lt.s32.totalorder %s16, 1
      %s174 = scalar_select %p173, %s16, 1
      %s175 = smul.addr %s174, 9
      %s176 = smul.addr %s175, 8
      %s177 = scalar_lea.vmem %s0, %s176
      %p178 = pneg %p37
      %p179 = pneg %p34
      %p180 = pneg %p58
      %p181 = pneg %p55
      %p182 = pneg %p84
      %p183 = pneg %p81
      %p184 = scmp.lt.s32.totalorder %s16, 1
      %s185 = scalar_select %p184, %s16, 1
      %s186 = smul.addr %s185, 4
      %s187 = smul.addr %s186, 8
      %s188 = scalar_lea.vmem %s2, %s187
      %p189 = pneg %p110
      %p190 = pneg %p107
      %p191 = scmp.lt.s32.totalorder %s16, 1
      %s192 = scalar_select %p191, %s16, 1
      %s193 = smul.addr %s192, 2
      %s194 = scalar_lea.vmem %s3, %s193
      %p195 = pneg %p136
      %p196 = pneg %p133
      %p197 = scmp.lt.s32.totalorder %s16, 1
      %s198 = scalar_select %p197, %s16, 1
      %s199 = smul.addr %s198, 2
      %s200 = scalar_lea.vmem %s4, %s199
      %p201 = scmp.lt.s32.totalorder %s16, 1
      %s202 = scalar_select %p201, %s16, 1
      %s203 = smul.addr %s202, 9
      %s204 = smul.addr %s203, 8
      %s205 = scalar_lea.vmem %s0, %s204
      %p206 = scmp.lt.s32.totalorder %s16, 1
      %s207 = scalar_select %p206, %s16, 1
      %s208 = smul.addr %s207, 4
      %s209 = smul.addr %s208, 8
      %s210 = scalar_lea.vmem %s2, %s209
      %p211 = scmp.lt.s32.totalorder %s16, 1
      %s212 = scalar_select %p211, %s16, 1
      %s213 = smul.addr %s212, 2
      %s214 = scalar_lea.vmem %s3, %s213
      %p215 = scmp.lt.s32.totalorder %s16, 1
      %s216 = scalar_select %p215, %s16, 1
      %s217 = smul.addr %s216, 2
      %s218 = scalar_lea.vmem %s4, %s217
      %v219 = vld [vmem:[%s205] sm:$0xff]
      %v220 = vld [vmem:[%s205 + $0x8] sm:$0xff]
      %v221 = vld [vmem:[%s205 + $0x10] sm:$0xff]
      %v222 = vld [vmem:[%s205 + $0x18] sm:$0xff]
      %v223 = vld [vmem:[%s205 + $0x20] sm:$0xff]
      %v224 = vld [vmem:[%s205 + $0x28] sm:$0xff]
      %v225 = vld [vmem:[%s1] sm:$0xff]
      %v226 = vld [vmem:[%s1 + $0x8] sm:$0xff]
      %v227 = vld [vmem:[%s1 + $0x10] sm:$0xff]
      %v228 = vld [vmem:[%s1 + $0x18] sm:$0xff]
      %v229 = vld [vmem:[%s1 + $0x20] sm:$0xff]
      %v230 = vld [vmem:[%s1 + $0x28] sm:$0xff]
      %v231 = vld [vmem:[%s1 + $0x30] sm:$0xff]
      %v232 = vld [vmem:[%s1 + $0x38] sm:$0xff]
      %v233 = vld [vmem:[%s1 + $0x40] sm:$0xff]
      %v234 = vld [vmem:[%s1 + $0x48] sm:$0xff]
      %v235 = vld [vmem:[%s1 + $0x50] sm:$0xff]
      %v236 = vld [vmem:[%s1 + $0x58] sm:$0xff]
      %v237 = vld [vmem:[%s1 + $0x60] sm:$0xff]
      %v238 = vld [vmem:[%s1 + $0x68] sm:$0xff]
      %v239 = vld [vmem:[%s1 + $0x70] sm:$0xff]
      %v240 = vld [vmem:[%s1 + $0x78] sm:$0xff]
      %v241 = vld [vmem:[%s1 + $0x80] sm:$0xff]
      %v242 = vld [vmem:[%s1 + $0x88] sm:$0xff]
      %v243 = vld [vmem:[%s1 + $0x90] sm:$0xff]
      %v244 = vld [vmem:[%s1 + $0x98] sm:$0xff]
      %v245 = vld [vmem:[%s1 + $0xa0] sm:$0xff]
      %v246 = vld [vmem:[%s1 + $0xa8] sm:$0xff]
      %v247 = vld [vmem:[%s1 + $0xb0] sm:$0xff]
      %v248 = vld [vmem:[%s1 + $0xb8] sm:$0xff]
      %v249 = vld [vmem:[%s1 + $0xc0] sm:$0xff]
      %v250 = vld [vmem:[%s1 + $0xc8] sm:$0xff]
      %v251 = vld [vmem:[%s1 + $0xd0] sm:$0xff]
      %v252 = vld [vmem:[%s1 + $0xd8] sm:$0xff]
      %v253 = vld [vmem:[%s1 + $0xe0] sm:$0xff]
      %v254 = vld [vmem:[%s1 + $0xe8] sm:$0xff]
      %v255 = vld [vmem:[%s1 + $0xf0] sm:$0xff]
      %v256 = vld [vmem:[%s1 + $0xf8] sm:$0xff]
      %v257 = vld [vmem:[%s1 + $0x100] sm:$0xff]
      %v258 = vld [vmem:[%s1 + $0x108] sm:$0xff]
      %v259 = vld [vmem:[%s1 + $0x110] sm:$0xff]
      %v260 = vld [vmem:[%s1 + $0x118] sm:$0xff]
      %v261 = vld [vmem:[%s1 + $0x120] sm:$0xff]
      %v262 = vld [vmem:[%s1 + $0x128] sm:$0xff]
      %v263 = vld [vmem:[%s1 + $0x130] sm:$0xff]
      %v264 = vld [vmem:[%s1 + $0x138] sm:$0xff]
      %v265 = vld [vmem:[%s1 + $0x140] sm:$0xff]
      %v266 = vld [vmem:[%s1 + $0x148] sm:$0xff]
      %v267 = vld [vmem:[%s1 + $0x150] sm:$0xff]
      %v268 = vld [vmem:[%s1 + $0x158] sm:$0xff]
      %v269 = vld [vmem:[%s1 + $0x160] sm:$0xff]
      %v270 = vld [vmem:[%s1 + $0x168] sm:$0xff]
      %v271 = vld [vmem:[%s1 + $0x170] sm:$0xff]
      %v272 = vld [vmem:[%s1 + $0x178] sm:$0xff]
      %v273 = vld [vmem:[%s1 + $0x180] sm:$0xff]
      %v274 = vld [vmem:[%s1 + $0x188] sm:$0xff]
      %v275 = vld [vmem:[%s1 + $0x190] sm:$0xff]
      %v276 = vld [vmem:[%s1 + $0x198] sm:$0xff]
      %v277 = vld [vmem:[%s1 + $0x1a0] sm:$0xff]
      %v278 = vld [vmem:[%s1 + $0x1a8] sm:$0xff]
      %v279 = vld [vmem:[%s1 + $0x1b0] sm:$0xff]
      %v280 = vld [vmem:[%s1 + $0x1b8] sm:$0xff]
      %v281 = vld [vmem:[%s1 + $0x1c0] sm:$0xff]
      %v282 = vld [vmem:[%s1 + $0x1c8] sm:$0xff]
      %v283 = vld [vmem:[%s1 + $0x1d0] sm:$0xff]
      %v284 = vld [vmem:[%s1 + $0x1d8] sm:$0xff]
      %v285 = vld [vmem:[%s1 + $0x1e0] sm:$0xff]
      %v286 = vld [vmem:[%s1 + $0x1e8] sm:$0xff]
      %v287 = vld [vmem:[%s1 + $0x1f0] sm:$0xff]
      %v288 = vld [vmem:[%s1 + $0x1f8] sm:$0xff]
      %v289 = vld [vmem:[%s1 + $0x200] sm:$0xff]
      %v290 = vld [vmem:[%s1 + $0x208] sm:$0xff]
      %v291 = vld [vmem:[%s1 + $0x210] sm:$0xff]
      %v292 = vld [vmem:[%s1 + $0x218] sm:$0xff]
      %v293 = vld [vmem:[%s1 + $0x220] sm:$0xff]
      %v294 = vld [vmem:[%s1 + $0x228] sm:$0xff]
      %v295 = vld [vmem:[%s1 + $0x230] sm:$0xff]
      %v296 = vld [vmem:[%s1 + $0x238] sm:$0xff]
      %v297 = vld [vmem:[%s205] sm:$0xfe]
      %v298 = vld [vmem:[%s205 + $0x8] sm:$0xfe]
      %v299 = vld [vmem:[%s205 + $0x10] sm:$0xfe]
      %v300 = vld [vmem:[%s205 + $0x30] sm:$0x1]
      %v301 = vld [vmem:[%s205 + $0x38] sm:$0x1]
      %v302 = vld [vmem:[%s205 + $0x40] sm:$0x1]
      %s303 = scalar_lea.vmem %s1, 576
      %v304 = vld [vmem:[%s303] sm:$0xff]
      %v305 = vld [vmem:[%s303 + $0x8] sm:$0xff]
      %v306 = vld [vmem:[%s303 + $0x10] sm:$0xff]
      %v307 = vld [vmem:[%s303 + $0x18] sm:$0xff]
      %v308 = vld [vmem:[%s303 + $0x20] sm:$0xff]
      %v309 = vld [vmem:[%s303 + $0x28] sm:$0xff]
      %v310 = vld [vmem:[%s303 + $0x30] sm:$0xff]
      %v311 = vld [vmem:[%s303 + $0x38] sm:$0xff]
      %v312 = vld [vmem:[%s303 + $0x40] sm:$0xff]
      %v313 = vld [vmem:[%s303 + $0x48] sm:$0xff]
      %v314 = vld [vmem:[%s303 + $0x50] sm:$0xff]
      %v315 = vld [vmem:[%s303 + $0x58] sm:$0xff]
      %v316 = vld [vmem:[%s303 + $0x60] sm:$0xff]
      %v317 = vld [vmem:[%s303 + $0x68] sm:$0xff]
      %v318 = vld [vmem:[%s303 + $0x70] sm:$0xff]
      %v319 = vld [vmem:[%s303 + $0x78] sm:$0xff]
      %v320 = vld [vmem:[%s303 + $0x80] sm:$0xff]
      %v321 = vld [vmem:[%s303 + $0x88] sm:$0xff]
      %v322 = vld [vmem:[%s303 + $0x90] sm:$0xff]
      %v323 = vld [vmem:[%s303 + $0x98] sm:$0xff]
      %v324 = vld [vmem:[%s303 + $0xa0] sm:$0xff]
      %v325 = vld [vmem:[%s303 + $0xa8] sm:$0xff]
      %v326 = vld [vmem:[%s303 + $0xb0] sm:$0xff]
      %v327 = vld [vmem:[%s303 + $0xb8] sm:$0xff]
      %v328 = vld [vmem:[%s303 + $0xc0] sm:$0xff]
      %v329 = vld [vmem:[%s303 + $0xc8] sm:$0xff]
      %v330 = vld [vmem:[%s303 + $0xd0] sm:$0xff]
      %v331 = vld [vmem:[%s303 + $0xd8] sm:$0xff]
      %v332 = vld [vmem:[%s303 + $0xe0] sm:$0xff]
      %v333 = vld [vmem:[%s303 + $0xe8] sm:$0xff]
      %v334 = vld [vmem:[%s303 + $0xf0] sm:$0xff]
      %v335 = vld [vmem:[%s303 + $0xf8] sm:$0xff]
      %v336 = vld [vmem:[%s303 + $0x100] sm:$0xff]
      %v337 = vld [vmem:[%s303 + $0x108] sm:$0xff]
      %v338 = vld [vmem:[%s303 + $0x110] sm:$0xff]
      %v339 = vld [vmem:[%s303 + $0x118] sm:$0xff]
      %v340 = vld [vmem:[%s303 + $0x120] sm:$0xff]
      %v341 = vld [vmem:[%s303 + $0x128] sm:$0xff]
      %v342 = vld [vmem:[%s303 + $0x130] sm:$0xff]
      %v343 = vld [vmem:[%s303 + $0x138] sm:$0xff]
      %v344 = vld [vmem:[%s303 + $0x140] sm:$0xff]
      %v345 = vld [vmem:[%s303 + $0x148] sm:$0xff]
      %v346 = vld [vmem:[%s303 + $0x150] sm:$0xff]
      %v347 = vld [vmem:[%s303 + $0x158] sm:$0xff]
      %v348 = vld [vmem:[%s303 + $0x160] sm:$0xff]
      %v349 = vld [vmem:[%s303 + $0x168] sm:$0xff]
      %v350 = vld [vmem:[%s303 + $0x170] sm:$0xff]
      %v351 = vld [vmem:[%s303 + $0x178] sm:$0xff]
      %v352 = vld [vmem:[%s303 + $0x180] sm:$0xff]
      %v353 = vld [vmem:[%s303 + $0x188] sm:$0xff]
      %v354 = vld [vmem:[%s303 + $0x190] sm:$0xff]
      %v355 = vld [vmem:[%s303 + $0x198] sm:$0xff]
      %v356 = vld [vmem:[%s303 + $0x1a0] sm:$0xff]
      %v357 = vld [vmem:[%s303 + $0x1a8] sm:$0xff]
      %v358 = vld [vmem:[%s303 + $0x1b0] sm:$0xff]
      %v359 = vld [vmem:[%s303 + $0x1b8] sm:$0xff]
      %v360 = vld [vmem:[%s303 + $0x1c0] sm:$0xff]
      %v361 = vld [vmem:[%s303 + $0x1c8] sm:$0xff]
      %v362 = vld [vmem:[%s303 + $0x1d0] sm:$0xff]
      %v363 = vld [vmem:[%s303 + $0x1d8] sm:$0xff]
      %v364 = vld [vmem:[%s303 + $0x1e0] sm:$0xff]
      %v365 = vld [vmem:[%s303 + $0x1e8] sm:$0xff]
      %v366 = vld [vmem:[%s303 + $0x1f0] sm:$0xff]
      %v367 = vld [vmem:[%s303 + $0x1f8] sm:$0xff]
      %v368 = vld [vmem:[%s303 + $0x200] sm:$0xff]
      %v369 = vld [vmem:[%s303 + $0x208] sm:$0xff]
      %v370 = vld [vmem:[%s303 + $0x210] sm:$0xff]
      %v371 = vld [vmem:[%s303 + $0x218] sm:$0xff]
      %v372 = vld [vmem:[%s303 + $0x220] sm:$0xff]
      %v373 = vld [vmem:[%s303 + $0x228] sm:$0xff]
      %v374 = vld [vmem:[%s303 + $0x230] sm:$0xff]
      %v375 = vld [vmem:[%s303 + $0x238] sm:$0xff]
      %vm385 = vcmask 1046528
      %v386 = vrot.slane %v297, 1
      %v387 = vrot.slane %v222, 1
      %v388 = vsel %vm385, %v386, %v387
      %v389 = vrot.slane %v298, 1
      %v390 = vrot.slane %v223, 1
      %v391 = vsel %vm385, %v389, %v390
      %v392 = vrot.slane %v299, 1
      %v393 = vrot.slane %v224, 1
      %v394 = vsel %vm385, %v392, %v393
      %v395 = vrot.slane %v300, 1
      %v396 = vsel %vm385, %v387, %v395
      %v397 = vrot.slane %v301, 1
      %v398 = vsel %vm385, %v390, %v397
      %v399 = vrot.slane %v302, 1
      %v400 = vsel %vm385, %v393, %v399
      %vm405 = vcmask 261120
      %v406 = vsel %vm405, %v394, 0
      %v408 = vsel %vm405, %v400, 0
      %410 = vmatprep.subr.mxu0 %v305
      %411 = vmatpush1.msra.mxu0 %v304
      %412 = vmatprep.subr.mxu0 %v307
      %413 = vmatpush1.msra.mxu0 %v306
      %414 = vmatprep.subr.mxu0 %v309
      %415 = vmatpush1.msra.mxu0 %v308
      %416 = vmatprep.subr.mxu0 %v311
      %417 = vmatpush1.msra.mxu0 %v310
      %418 = vmatprep.subr.mxu0 %v313
      %419 = vmatpush1.msra.mxu0 %v312
      %420 = vmatprep.subr.mxu0 %v315
      %421 = vmatpush1.msra.mxu0 %v314
      %422 = vmatprep.subr.mxu0 %v317
      %423 = vmatpush1.msra.mxu0 %v316
      %424 = vmatprep.subr.mxu0 %v319
      %425 = vmatpush1.msra.mxu0 %v318
      %426 = vmatprep.subr.mxu0 %v321
      %427 = vmatpush1.msra.mxu0 %v320
      %428 = vmatprep.subr.mxu0 %v323
      %429 = vmatpush1.msra.mxu0 %v322
      %430 = vmatprep.subr.mxu0 %v325
      %431 = vmatpush1.msra.mxu0 %v324
      %432 = vmatprep.subr.mxu0 %v327
      %433 = vmatpush1.msra.mxu0 %v326
      %434 = vmatprep.subr.mxu0 %v329
      %435 = vmatpush1.msra.mxu0 %v328
      %436 = vmatprep.subr.mxu0 %v331
      %437 = vmatpush1.msra.mxu0 %v330
      %438 = vmatprep.subr.mxu0 %v333
      %439 = vmatpush1.msra.mxu0 %v332
      %440 = vmatprep.subr.mxu0 %v335
      %441 = vmatpush1.msra.mxu0 %v334
      %442 = vmatprep.subr.mxu0 %v337
      %443 = vmatpush1.msra.mxu0 %v336
      %444 = vmatprep.subr.mxu0 %v339
      %445 = vmatpush1.msra.mxu0 %v338
      %446 = vmatprep.subr.mxu0 %v341
      %447 = vmatpush1.msra.mxu0 %v340
      %448 = vmatprep.subr.mxu0 %v343
      %449 = vmatpush1.msra.mxu0 %v342
      %450 = vmatprep.subr.mxu0 %v345
      %451 = vmatpush1.msra.mxu0 %v344
      %452 = vmatprep.subr.mxu0 %v347
      %453 = vmatpush1.msra.mxu0 %v346
      %454 = vmatprep.subr.mxu0 %v349
      %455 = vmatpush1.msra.mxu0 %v348
      %456 = vmatprep.subr.mxu0 %v351
      %457 = vmatpush1.msra.mxu0 %v350
      %458 = vmatprep.subr.mxu0 %v353
      %459 = vmatpush1.msra.mxu0 %v352
      %460 = vmatprep.subr.mxu0 %v355
      %461 = vmatpush1.msra.mxu0 %v354
      %462 = vmatprep.subr.mxu0 %v357
      %463 = vmatpush1.msra.mxu0 %v356
      %464 = vmatprep.subr.mxu0 %v359
      %465 = vmatpush1.msra.mxu0 %v358
      %466 = vmatprep.subr.mxu0 %v361
      %467 = vmatpush1.msra.mxu0 %v360
      %468 = vmatprep.subr.mxu0 %v363
      %469 = vmatpush1.msra.mxu0 %v362
      %470 = vmatprep.subr.mxu0 %v365
      %471 = vmatpush1.msra.mxu0 %v364
      %472 = vmatprep.subr.mxu0 %v367
      %473 = vmatpush1.msra.mxu0 %v366
      %474 = vmatprep.mubr.f32.mxu0 %v391
      %475 = vmatmul.mubr.f32.gmra.mrb[0].mxu0 %v388
      %v476 = vpop.f32.mrb[0].mxu0
      %v477 = vadd.f32 0.0, %v476
      %v478 = vpop.f32.mrb[0].mxu0
      %v479 = vadd.f32 0.0, %v478
      %480 = vmatprep.mubr.f32.mxu0 %v398
      %481 = vmatmul.mubr.f32.gmra.mrb[0].mxu0 %v396
      %v482 = vpop.f32.mrb[0].mxu0
      %v483 = vadd.f32 0.0, %v482
      %v484 = vpop.f32.mrb[0].mxu0
      %v485 = vadd.f32 0.0, %v484
      %486 = vdwg.mxu0
      %487 = vmatprep.subr.mxu0 %v369
      %488 = vmatpush1.msra.mxu0 %v368
      %489 = vmatprep.subr.mxu0 %v371
      %490 = vmatpush1.msra.mxu0 %v370
      %491 = vmatprep.subr.mxu0 %v373
      %492 = vmatpush1.msra.mxu0 %v372
      %493 = vmatprep.subr.mxu0 %v375
      %494 = vmatpush1.msra.mxu0 %v374
      %495 = vmatprep.subr.mxu0 0.0
      %496 = vmatpush1.msra.mxu0 0.0
      %497 = vmatprep.subr.mxu0 0.0
      %498 = vmatpush1.msra.mxu0 0.0
      %499 = vmatprep.subr.mxu0 0.0
      %500 = vmatpush1.msra.mxu0 0.0
      %501 = vmatprep.subr.mxu0 0.0
      %502 = vmatpush1.msra.mxu0 0.0
      %503 = vmatprep.subr.mxu0 0.0
      %504 = vmatpush1.msra.mxu0 0.0
      %505 = vmatprep.subr.mxu0 0.0
      %506 = vmatpush1.msra.mxu0 0.0
      %507 = vmatprep.subr.mxu0 0.0
      %508 = vmatpush1.msra.mxu0 0.0
      %509 = vmatprep.subr.mxu0 0.0
      %510 = vmatpush1.msra.mxu0 0.0
      %511 = vmatprep.subr.mxu0 0.0
      %512 = vmatpush1.msra.mxu0 0.0
      %513 = vmatprep.subr.mxu0 0.0
      %514 = vmatpush1.msra.mxu0 0.0
      %515 = vmatprep.subr.mxu0 0.0
      %516 = vmatpush1.msra.mxu0 0.0
      %517 = vmatprep.subr.mxu0 0.0
      %518 = vmatpush1.msra.mxu0 0.0
      %519 = vmatprep.subr.mxu0 0.0
      %520 = vmatpush1.msra.mxu0 0.0
      %521 = vmatprep.subr.mxu0 0.0
      %522 = vmatpush1.msra.mxu0 0.0
      %523 = vmatprep.subr.mxu0 0.0
      %524 = vmatpush1.msra.mxu0 0.0
      %525 = vmatprep.subr.mxu0 0.0
      %526 = vmatpush1.msra.mxu0 0.0
      %527 = vmatprep.subr.mxu0 0.0
      %528 = vmatpush1.msra.mxu0 0.0
      %529 = vmatprep.subr.mxu0 0.0
      %530 = vmatpush1.msra.mxu0 0.0
      %531 = vmatprep.subr.mxu0 0.0
      %532 = vmatpush1.msra.mxu0 0.0
      %533 = vmatprep.subr.mxu0 0.0
      %534 = vmatpush1.msra.mxu0 0.0
      %535 = vmatprep.subr.mxu0 0.0
      %536 = vmatpush1.msra.mxu0 0.0
      %537 = vmatprep.subr.mxu0 0.0
      %538 = vmatpush1.msra.mxu0 0.0
      %539 = vmatprep.subr.mxu0 0.0
      %540 = vmatpush1.msra.mxu0 0.0
      %541 = vmatprep.subr.mxu0 0.0
      %542 = vmatpush1.msra.mxu0 0.0
      %543 = vmatprep.subr.mxu0 0.0
      %544 = vmatpush1.msra.mxu0 0.0
      %545 = vmatprep.subr.mxu0 0.0
      %546 = vmatpush1.msra.mxu0 0.0
      %547 = vmatprep.subr.mxu0 0.0
      %548 = vmatpush1.msra.mxu0 0.0
      %549 = vmatprep.subr.mxu0 0.0
      %550 = vmatpush1.msra.mxu0 0.0
      %551 = vmatprep.mubr.f32.mxu0 0.0
      %552 = vmatmul.mubr.f32.gmra.mrb[0].mxu0 %v406
      %v553 = vpop.f32.mrb[0].mxu0
      %v554 = vadd.f32 %v477, %v553
      %v555 = vpop.f32.mrb[0].mxu0
      %v556 = vadd.f32 %v479, %v555
      %557 = vmatprep.mubr.f32.mxu0 0.0
      %558 = vmatmul.mubr.f32.gmra.mrb[0].mxu0 %v408
      %v559 = vpop.f32.mrb[0].mxu0
      %v560 = vadd.f32 %v483, %v559
      %v561 = vpop.f32.mrb[0].mxu0
      %v562 = vadd.f32 %v485, %v561
      %563 = vdwg.mxu0
      %v565 = vsel %vm405, %v221, 0
      %v567 = vsel %vm405, %v224, 0
      %569 = vmatprep.subr.mxu0 %v226
      %570 = vmatpush1.msra.mxu0 %v225
      %571 = vmatprep.subr.mxu0 %v228
      %572 = vmatpush1.msra.mxu0 %v227
      %573 = vmatprep.subr.mxu0 %v230
      %574 = vmatpush1.msra.mxu0 %v229
      %575 = vmatprep.subr.mxu0 %v232
      %576 = vmatpush1.msra.mxu0 %v231
      %577 = vmatprep.subr.mxu0 %v234
      %578 = vmatpush1.msra.mxu0 %v233
      %579 = vmatprep.subr.mxu0 %v236
      %580 = vmatpush1.msra.mxu0 %v235
      %581 = vmatprep.subr.mxu0 %v238
      %582 = vmatpush1.msra.mxu0 %v237
      %583 = vmatprep.subr.mxu0 %v240
      %584 = vmatpush1.msra.mxu0 %v239
      %585 = vmatprep.subr.mxu0 %v242
      %586 = vmatpush1.msra.mxu0 %v241
      %587 = vmatprep.subr.mxu0 %v244
      %588 = vmatpush1.msra.mxu0 %v243
      %589 = vmatprep.subr.mxu0 %v246
      %590 = vmatpush1.msra.mxu0 %v245
      %591 = vmatprep.subr.mxu0 %v248
      %592 = vmatpush1.msra.mxu0 %v247
      %593 = vmatprep.subr.mxu0 %v250
      %594 = vmatpush1.msra.mxu0 %v249
      %595 = vmatprep.subr.mxu0 %v252
      %596 = vmatpush1.msra.mxu0 %v251
      %597 = vmatprep.subr.mxu0 %v254
      %598 = vmatpush1.msra.mxu0 %v253
      %599 = vmatprep.subr.mxu0 %v256
      %600 = vmatpush1.msra.mxu0 %v255
      %601 = vmatprep.subr.mxu0 %v258
      %602 = vmatpush1.msra.mxu0 %v257
      %603 = vmatprep.subr.mxu0 %v260
      %604 = vmatpush1.msra.mxu0 %v259
      %605 = vmatprep.subr.mxu0 %v262
      %606 = vmatpush1.msra.mxu0 %v261
      %607 = vmatprep.subr.mxu0 %v264
      %608 = vmatpush1.msra.mxu0 %v263
      %609 = vmatprep.subr.mxu0 %v266
      %610 = vmatpush1.msra.mxu0 %v265
      %611 = vmatprep.subr.mxu0 %v268
      %612 = vmatpush1.msra.mxu0 %v267
      %613 = vmatprep.subr.mxu0 %v270
      %614 = vmatpush1.msra.mxu0 %v269
      %615 = vmatprep.subr.mxu0 %v272
      %616 = vmatpush1.msra.mxu0 %v271
      %617 = vmatprep.subr.mxu0 %v274
      %618 = vmatpush1.msra.mxu0 %v273
      %619 = vmatprep.subr.mxu0 %v276
      %620 = vmatpush1.msra.mxu0 %v275
      %621 = vmatprep.subr.mxu0 %v278
      %622 = vmatpush1.msra.mxu0 %v277
      %623 = vmatprep.subr.mxu0 %v280
      %624 = vmatpush1.msra.mxu0 %v279
      %625 = vmatprep.subr.mxu0 %v282
      %626 = vmatpush1.msra.mxu0 %v281
      %627 = vmatprep.subr.mxu0 %v284
      %628 = vmatpush1.msra.mxu0 %v283
      %629 = vmatprep.subr.mxu0 %v286
      %630 = vmatpush1.msra.mxu0 %v285
      %631 = vmatprep.subr.mxu0 %v288
      %632 = vmatpush1.msra.mxu0 %v287
      %633 = vmatprep.mubr.f32.mxu0 %v220
      %634 = vmatmul.mubr.f32.gmra.mrb[0].mxu0 %v219
      %v635 = vpop.f32.mrb[0].mxu0
      %v636 = vadd.f32 %v554, %v635
      %v637 = vpop.f32.mrb[0].mxu0
      %v638 = vadd.f32 %v556, %v637
      %639 = vmatprep.mubr.f32.mxu0 %v223
      %640 = vmatmul.mubr.f32.gmra.mrb[0].mxu0 %v222
      %v641 = vpop.f32.mrb[0].mxu0
      %v642 = vadd.f32 %v560, %v641
      %v643 = vpop.f32.mrb[0].mxu0
      %v644 = vadd.f32 %v562, %v643
      %645 = vdwg.mxu0
      %646 = vmatprep.subr.mxu0 %v290
      %647 = vmatpush1.msra.mxu0 %v289
      %648 = vmatprep.subr.mxu0 %v292
      %649 = vmatpush1.msra.mxu0 %v291
      %650 = vmatprep.subr.mxu0 %v294
      %651 = vmatpush1.msra.mxu0 %v293
      %652 = vmatprep.subr.mxu0 %v296
      %653 = vmatpush1.msra.mxu0 %v295
      %654 = vmatprep.subr.mxu0 0.0
      %655 = vmatpush1.msra.mxu0 0.0
      %656 = vmatprep.subr.mxu0 0.0
      %657 = vmatpush1.msra.mxu0 0.0
      %658 = vmatprep.subr.mxu0 0.0
      %659 = vmatpush1.msra.mxu0 0.0
      %660 = vmatprep.subr.mxu0 0.0
      %661 = vmatpush1.msra.mxu0 0.0
      %662 = vmatprep.subr.mxu0 0.0
      %663 = vmatpush1.msra.mxu0 0.0
      %664 = vmatprep.subr.mxu0 0.0
      %665 = vmatpush1.msra.mxu0 0.0
      %666 = vmatprep.subr.mxu0 0.0
      %667 = vmatpush1.msra.mxu0 0.0
      %668 = vmatprep.subr.mxu0 0.0
      %669 = vmatpush1.msra.mxu0 0.0
      %670 = vmatprep.subr.mxu0 0.0
      %671 = vmatpush1.msra.mxu0 0.0
      %672 = vmatprep.subr.mxu0 0.0
      %673 = vmatpush1.msra.mxu0 0.0
      %674 = vmatprep.subr.mxu0 0.0
      %675 = vmatpush1.msra.mxu0 0.0
      %676 = vmatprep.subr.mxu0 0.0
      %677 = vmatpush1.msra.mxu0 0.0
      %678 = vmatprep.subr.mxu0 0.0
      %679 = vmatpush1.msra.mxu0 0.0
      %680 = vmatprep.subr.mxu0 0.0
      %681 = vmatpush1.msra.mxu0 0.0
      %682 = vmatprep.subr.mxu0 0.0
      %683 = vmatpush1.msra.mxu0 0.0
      %684 = vmatprep.subr.mxu0 0.0
      %685 = vmatpush1.msra.mxu0 0.0
      %686 = vmatprep.subr.mxu0 0.0
      %687 = vmatpush1.msra.mxu0 0.0
      %688 = vmatprep.subr.mxu0 0.0
      %689 = vmatpush1.msra.mxu0 0.0
      %690 = vmatprep.subr.mxu0 0.0
      %691 = vmatpush1.msra.mxu0 0.0
      %692 = vmatprep.subr.mxu0 0.0
      %693 = vmatpush1.msra.mxu0 0.0
      %694 = vmatprep.subr.mxu0 0.0
      %695 = vmatpush1.msra.mxu0 0.0
      %696 = vmatprep.subr.mxu0 0.0
      %697 = vmatpush1.msra.mxu0 0.0
      %698 = vmatprep.subr.mxu0 0.0
      %699 = vmatpush1.msra.mxu0 0.0
      %700 = vmatprep.subr.mxu0 0.0
      %701 = vmatpush1.msra.mxu0 0.0
      %702 = vmatprep.subr.mxu0 0.0
      %703 = vmatpush1.msra.mxu0 0.0
      %704 = vmatprep.subr.mxu0 0.0
      %705 = vmatpush1.msra.mxu0 0.0
      %706 = vmatprep.subr.mxu0 0.0
      %707 = vmatpush1.msra.mxu0 0.0
      %708 = vmatprep.subr.mxu0 0.0
      %709 = vmatpush1.msra.mxu0 0.0
      %710 = vmatprep.mubr.f32.mxu0 0.0
      %711 = vmatmul.mubr.f32.gmra.mrb[0].mxu0 %v565
      %v712 = vpop.f32.mrb[0].mxu0
      %v713 = vadd.f32 %v636, %v712
      %v714 = vpop.f32.mrb[0].mxu0
      %v715 = vadd.f32 %v638, %v714
      %716 = vmatprep.mubr.f32.mxu0 0.0
      %717 = vmatmul.mubr.f32.gmra.mrb[0].mxu0 %v567
      %v718 = vpop.f32.mrb[0].mxu0
      %v719 = vadd.f32 %v642, %v718
      %v720 = vpop.f32.mrb[0].mxu0
      %v721 = vadd.f32 %v644, %v720
      %722 = vdwg.mxu0
      %v723 = vld [vmem:[%s205] sm:$0xfc]
      %v724 = vld [vmem:[%s205 + $0x8] sm:$0xfc]
      %v725 = vld [vmem:[%s205 + $0x10] sm:$0xfc]
      %v726 = vld [vmem:[%s205 + $0x30] sm:$0x3]
      %v727 = vld [vmem:[%s205 + $0x38] sm:$0x3]
      %v728 = vld [vmem:[%s205 + $0x40] sm:$0x3]
      %s729 = scalar_lea.vmem %s1, 1152
      %v730 = vld [vmem:[%s729] sm:$0xff]
      %v731 = vld [vmem:[%s729 + $0x8] sm:$0xff]
      %v732 = vld [vmem:[%s729 + $0x10] sm:$0xff]
      %v733 = vld [vmem:[%s729 + $0x18] sm:$0xff]
      %v734 = vld [vmem:[%s729 + $0x20] sm:$0xff]
      %v735 = vld [vmem:[%s729 + $0x28] sm:$0xff]
      %v736 = vld [vmem:[%s729 + $0x30] sm:$0xff]
      %v737 = vld [vmem:[%s729 + $0x38] sm:$0xff]
      %v738 = vld [vmem:[%s729 + $0x40] sm:$0xff]
      %v739 = vld [vmem:[%s729 + $0x48] sm:$0xff]
      %v740 = vld [vmem:[%s729 + $0x50] sm:$0xff]
      %v741 = vld [vmem:[%s729 + $0x58] sm:$0xff]
      %v742 = vld [vmem:[%s729 + $0x60] sm:$0xff]
      %v743 = vld [vmem:[%s729 + $0x68] sm:$0xff]
      %v744 = vld [vmem:[%s729 + $0x70] sm:$0xff]
      %v745 = vld [vmem:[%s729 + $0x78] sm:$0xff]
      %v746 = vld [vmem:[%s729 + $0x80] sm:$0xff]
      %v747 = vld [vmem:[%s729 + $0x88] sm:$0xff]
      %v748 = vld [vmem:[%s729 + $0x90] sm:$0xff]
      %v749 = vld [vmem:[%s729 + $0x98] sm:$0xff]
      %v750 = vld [vmem:[%s729 + $0xa0] sm:$0xff]
      %v751 = vld [vmem:[%s729 + $0xa8] sm:$0xff]
      %v752 = vld [vmem:[%s729 + $0xb0] sm:$0xff]
      %v753 = vld [vmem:[%s729 + $0xb8] sm:$0xff]
      %v754 = vld [vmem:[%s729 + $0xc0] sm:$0xff]
      %v755 = vld [vmem:[%s729 + $0xc8] sm:$0xff]
      %v756 = vld [vmem:[%s729 + $0xd0] sm:$0xff]
      %v757 = vld [vmem:[%s729 + $0xd8] sm:$0xff]
      %v758 = vld [vmem:[%s729 + $0xe0] sm:$0xff]
      %v759 = vld [vmem:[%s729 + $0xe8] sm:$0xff]
      %v760 = vld [vmem:[%s729 + $0xf0] sm:$0xff]
      %v761 = vld [vmem:[%s729 + $0xf8] sm:$0xff]
      %v762 = vld [vmem:[%s729 + $0x100] sm:$0xff]
      %v763 = vld [vmem:[%s729 + $0x108] sm:$0xff]
      %v764 = vld [vmem:[%s729 + $0x110] sm:$0xff]
      %v765 = vld [vmem:[%s729 + $0x118] sm:$0xff]
      %v766 = vld [vmem:[%s729 + $0x120] sm:$0xff]
      %v767 = vld [vmem:[%s729 + $0x128] sm:$0xff]
      %v768 = vld [vmem:[%s729 + $0x130] sm:$0xff]
      %v769 = vld [vmem:[%s729 + $0x138] sm:$0xff]
      %v770 = vld [vmem:[%s729 + $0x140] sm:$0xff]
      %v771 = vld [vmem:[%s729 + $0x148] sm:$0xff]
      %v772 = vld [vmem:[%s729 + $0x150] sm:$0xff]
      %v773 = vld [vmem:[%s729 + $0x158] sm:$0xff]
      %v774 = vld [vmem:[%s729 + $0x160] sm:$0xff]
      %v775 = vld [vmem:[%s729 + $0x168] sm:$0xff]
      %v776 = vld [vmem:[%s729 + $0x170] sm:$0xff]
      %v777 = vld [vmem:[%s729 + $0x178] sm:$0xff]
      %v778 = vld [vmem:[%s729 + $0x180] sm:$0xff]
      %v779 = vld [vmem:[%s729 + $0x188] sm:$0xff]
      %v780 = vld [vmem:[%s729 + $0x190] sm:$0xff]
      %v781 = vld [vmem:[%s729 + $0x198] sm:$0xff]
      %v782 = vld [vmem:[%s729 + $0x1a0] sm:$0xff]
      %v783 = vld [vmem:[%s729 + $0x1a8] sm:$0xff]
      %v784 = vld [vmem:[%s729 + $0x1b0] sm:$0xff]
      %v785 = vld [vmem:[%s729 + $0x1b8] sm:$0xff]
      %v786 = vld [vmem:[%s729 + $0x1c0] sm:$0xff]
      %v787 = vld [vmem:[%s729 + $0x1c8] sm:$0xff]
      %v788 = vld [vmem:[%s729 + $0x1d0] sm:$0xff]
      %v789 = vld [vmem:[%s729 + $0x1d8] sm:$0xff]
      %v790 = vld [vmem:[%s729 + $0x1e0] sm:$0xff]
      %v791 = vld [vmem:[%s729 + $0x1e8] sm:$0xff]
      %v792 = vld [vmem:[%s729 + $0x1f0] sm:$0xff]
      %v793 = vld [vmem:[%s729 + $0x1f8] sm:$0xff]
      %v794 = vld [vmem:[%s729 + $0x200] sm:$0xff]
      %v795 = vld [vmem:[%s729 + $0x208] sm:$0xff]
      %v796 = vld [vmem:[%s729 + $0x210] sm:$0xff]
      %v797 = vld [vmem:[%s729 + $0x218] sm:$0xff]
      %v798 = vld [vmem:[%s729 + $0x220] sm:$0xff]
      %v799 = vld [vmem:[%s729 + $0x228] sm:$0xff]
      %v800 = vld [vmem:[%s729 + $0x230] sm:$0xff]
      %v801 = vld [vmem:[%s729 + $0x238] sm:$0xff]
      %vm808 = vcmask 1045504
      %v809 = vrot.slane %v723, 2
      %v810 = vrot.slane %v222, 2
      %v811 = vsel %vm808, %v809, %v810
      %v812 = vrot.slane %v724, 2
      %v813 = vrot.slane %v223, 2
      %v814 = vsel %vm808, %v812, %v813
      %v815 = vrot.slane %v725, 2
      %v816 = vrot.slane %v224, 2
      %v817 = vsel %vm808, %v815, %v816
      %v818 = vrot.slane %v726, 2
      %v819 = vsel %vm808, %v810, %v818
      %v820 = vrot.slane %v727, 2
      %v821 = vsel %vm808, %v813, %v820
      %v822 = vrot.slane %v728, 2
      %v823 = vsel %vm808, %v816, %v822
      %v828 = vsel %vm405, %v817, 0
      %v830 = vsel %vm405, %v823, 0
      %832 = vmatprep.subr.mxu0 %v731
      %833 = vmatpush1.msra.mxu0 %v730
      %834 = vmatprep.subr.mxu0 %v733
      %835 = vmatpush1.msra.mxu0 %v732
      %836 = vmatprep.subr.mxu0 %v735
      %837 = vmatpush1.msra.mxu0 %v734
      %838 = vmatprep.subr.mxu0 %v737
      %839 = vmatpush1.msra.mxu0 %v736
      %840 = vmatprep.subr.mxu0 %v739
      %841 = vmatpush1.msra.mxu0 %v738
      %842 = vmatprep.subr.mxu0 %v741
      %843 = vmatpush1.msra.mxu0 %v740
      %844 = vmatprep.subr.mxu0 %v743
      %845 = vmatpush1.msra.mxu0 %v742
      %846 = vmatprep.subr.mxu0 %v745
      %847 = vmatpush1.msra.mxu0 %v744
      %848 = vmatprep.subr.mxu0 %v747
      %849 = vmatpush1.msra.mxu0 %v746
      %850 = vmatprep.subr.mxu0 %v749
      %851 = vmatpush1.msra.mxu0 %v748
      %852 = vmatprep.subr.mxu0 %v751
      %853 = vmatpush1.msra.mxu0 %v750
      %854 = vmatprep.subr.mxu0 %v753
      %855 = vmatpush1.msra.mxu0 %v752
      %856 = vmatprep.subr.mxu0 %v755
      %857 = vmatpush1.msra.mxu0 %v754
      %858 = vmatprep.subr.mxu0 %v757
      %859 = vmatpush1.msra.mxu0 %v756
      %860 = vmatprep.subr.mxu0 %v759
      %861 = vmatpush1.msra.mxu0 %v758
      %862 = vmatprep.subr.mxu0 %v761
      %863 = vmatpush1.msra.mxu0 %v760
      %864 = vmatprep.subr.mxu0 %v763
      %865 = vmatpush1.msra.mxu0 %v762
      %866 = vmatprep.subr.mxu0 %v765
      %867 = vmatpush1.msra.mxu0 %v764
      %868 = vmatprep.subr.mxu0 %v767
      %869 = vmatpush1.msra.mxu0 %v766
      %870 = vmatprep.subr.mxu0 %v769
      %871 = vmatpush1.msra.mxu0 %v768
      %872 = vmatprep.subr.mxu0 %v771
      %873 = vmatpush1.msra.mxu0 %v770
      %874 = vmatprep.subr.mxu0 %v773
      %875 = vmatpush1.msra.mxu0 %v772
      %876 = vmatprep.subr.mxu0 %v775
      %877 = vmatpush1.msra.mxu0 %v774
      %878 = vmatprep.subr.mxu0 %v777
      %879 = vmatpush1.msra.mxu0 %v776
      %880 = vmatprep.subr.mxu0 %v779
      %881 = vmatpush1.msra.mxu0 %v778
      %882 = vmatprep.subr.mxu0 %v781
      %883 = vmatpush1.msra.mxu0 %v780
      %884 = vmatprep.subr.mxu0 %v783
      %885 = vmatpush1.msra.mxu0 %v782
      %886 = vmatprep.subr.mxu0 %v785
      %887 = vmatpush1.msra.mxu0 %v784
      %888 = vmatprep.subr.mxu0 %v787
      %889 = vmatpush1.msra.mxu0 %v786
      %890 = vmatprep.subr.mxu0 %v789
      %891 = vmatpush1.msra.mxu0 %v788
      %892 = vmatprep.subr.mxu0 %v791
      %893 = vmatpush1.msra.mxu0 %v790
      %894 = vmatprep.subr.mxu0 %v793
      %895 = vmatpush1.msra.mxu0 %v792
      %896 = vmatprep.mubr.f32.mxu0 %v814
      %897 = vmatmul.mubr.f32.gmra.mrb[0].mxu0 %v811
      %v898 = vpop.f32.mrb[0].mxu0
      %v899 = vadd.f32 0.0, %v898
      %v900 = vpop.f32.mrb[0].mxu0
      %v901 = vadd.f32 0.0, %v900
      %902 = vmatprep.mubr.f32.mxu0 %v821
      %903 = vmatmul.mubr.f32.gmra.mrb[0].mxu0 %v819
      %v904 = vpop.f32.mrb[0].mxu0
      %v905 = vadd.f32 0.0, %v904
      %v906 = vpop.f32.mrb[0].mxu0
      %v907 = vadd.f32 0.0, %v906
      %908 = vdwg.mxu0
      %909 = vmatprep.subr.mxu0 %v795
      %910 = vmatpush1.msra.mxu0 %v794
      %911 = vmatprep.subr.mxu0 %v797
      %912 = vmatpush1.msra.mxu0 %v796
      %913 = vmatprep.subr.mxu0 %v799
      %914 = vmatpush1.msra.mxu0 %v798
      %915 = vmatprep.subr.mxu0 %v801
      %916 = vmatpush1.msra.mxu0 %v800
      %917 = vmatprep.subr.mxu0 0.0
      %918 = vmatpush1.msra.mxu0 0.0
      %919 = vmatprep.subr.mxu0 0.0
      %920 = vmatpush1.msra.mxu0 0.0
      %921 = vmatprep.subr.mxu0 0.0
      %922 = vmatpush1.msra.mxu0 0.0
      %923 = vmatprep.subr.mxu0 0.0
      %924 = vmatpush1.msra.mxu0 0.0
      %925 = vmatprep.subr.mxu0 0.0
      %926 = vmatpush1.msra.mxu0 0.0
      %927 = vmatprep.subr.mxu0 0.0
      %928 = vmatpush1.msra.mxu0 0.0
      %929 = vmatprep.subr.mxu0 0.0
      %930 = vmatpush1.msra.mxu0 0.0
      %931 = vmatprep.subr.mxu0 0.0
      %932 = vmatpush1.msra.mxu0 0.0
      %933 = vmatprep.subr.mxu0 0.0
      %934 = vmatpush1.msra.mxu0 0.0
      %935 = vmatprep.subr.mxu0 0.0
      %936 = vmatpush1.msra.mxu0 0.0
      %937 = vmatprep.subr.mxu0 0.0
      %938 = vmatpush1.msra.mxu0 0.0
      %939 = vmatprep.subr.mxu0 0.0
      %940 = vmatpush1.msra.mxu0 0.0
      %941 = vmatprep.subr.mxu0 0.0
      %942 = vmatpush1.msra.mxu0 0.0
      %943 = vmatprep.subr.mxu0 0.0
      %944 = vmatpush1.msra.mxu0 0.0
      %945 = vmatprep.subr.mxu0 0.0
      %946 = vmatpush1.msra.mxu0 0.0
      %947 = vmatprep.subr.mxu0 0.0
      %948 = vmatpush1.msra.mxu0 0.0
      %949 = vmatprep.subr.mxu0 0.0
      %950 = vmatpush1.msra.mxu0 0.0
      %951 = vmatprep.subr.mxu0 0.0
      %952 = vmatpush1.msra.mxu0 0.0
      %953 = vmatprep.subr.mxu0 0.0
      %954 = vmatpush1.msra.mxu0 0.0
      %955 = vmatprep.subr.mxu0 0.0
      %956 = vmatpush1.msra.mxu0 0.0
      %957 = vmatprep.subr.mxu0 0.0
      %958 = vmatpush1.msra.mxu0 0.0
      %959 = vmatprep.subr.mxu0 0.0
      %960 = vmatpush1.msra.mxu0 0.0
      %961 = vmatprep.subr.mxu0 0.0
      %962 = vmatpush1.msra.mxu0 0.0
      %963 = vmatprep.subr.mxu0 0.0
      %964 = vmatpush1.msra.mxu0 0.0
      %965 = vmatprep.subr.mxu0 0.0
      %966 = vmatpush1.msra.mxu0 0.0
      %967 = vmatprep.subr.mxu0 0.0
      %968 = vmatpush1.msra.mxu0 0.0
      %969 = vmatprep.subr.mxu0 0.0
      %970 = vmatpush1.msra.mxu0 0.0
      %971 = vmatprep.subr.mxu0 0.0
      %972 = vmatpush1.msra.mxu0 0.0
      %973 = vmatprep.mubr.f32.mxu0 0.0
      %974 = vmatmul.mubr.f32.gmra.mrb[0].mxu0 %v828
      %v975 = vpop.f32.mrb[0].mxu0
      %v976 = vadd.f32 %v899, %v975
      %v977 = vpop.f32.mrb[0].mxu0
      %v978 = vadd.f32 %v901, %v977
      %979 = vmatprep.mubr.f32.mxu0 0.0
      %980 = vmatmul.mubr.f32.gmra.mrb[0].mxu0 %v830
      %v981 = vpop.f32.mrb[0].mxu0
      %v982 = vadd.f32 %v905, %v981
      %v983 = vpop.f32.mrb[0].mxu0
      %v984 = vadd.f32 %v907, %v983
      %985 = vdwg.mxu0
      %v986 = vadd.f32 %v713, %v976
      %v987 = vadd.f32 %v715, %v978
      %v988 = vadd.f32 %v719, %v982
      %v989 = vadd.f32 %v721, %v984
      %990 = vst [vmem:[%s210] sm:$0xff] %v986
      %991 = vst [vmem:[%s210 + $0x8] sm:$0xff] %v987
      %992 = vst [vmem:[%s210 + $0x10] sm:$0xff] %v988
      %993 = vst [vmem:[%s210 + $0x18] sm:$0xff] %v989
      %v994 = vadd.f32 %v986, %v988
      %v995 = vrot.slane %v994, 4
      %v996 = vadd.f32 %v994, %v995
      %v997 = vrot.slane %v996, 2
      %v998 = vadd.f32 %v996, %v997
      %v999 = vrot.slane %v998, 1
      %v1000 = vadd.f32 %v998, %v999
      %v1001 = vadd.f32 %v987, %v989
      %v1002 = vrot.slane %v1001, 4
      %v1003 = vadd.f32 %v1001, %v1002
      %v1004 = vrot.slane %v1003, 2
      %v1005 = vadd.f32 %v1003, %v1004
      %v1006 = vrot.slane %v1005, 1
      %v1007 = vadd.f32 %v1005, %v1006
      %v1010 = vcombine.low %v1000, %v1007
      %v1012 = vunpack.c.l.s4 1966171168
      %v1013 = vunpack.c.0.s8 %v1012
      %v1014 = vlaneseq
      %v1015 = vshrl.u32 %v1014, 7
      %v1016 = vsub.s32 %v1013, %v1015
      %v1017 = vrot.slane %v1010, %v1016
      %v1019 = vunpack.c.l.s4 1966171168
      %v1020 = vunpack.c.0.s8 %v1019
      %v1021 = vlaneseq
      %v1022 = vshrl.u32 %v1021, 7
      %v1023 = vsub.s32 %v1020, %v1022
      %v1024 = vrot.slane %v1017, %v1023
      %v1026 = vlaneseq
      %vm1027 = vcmp.ge.s32.totalorder %v1026, 0
      %vm1028 = vcmp.lt.s32.totalorder %v1026, 256
      %vm1029 = vmand %vm1027, %vm1028
      %1030 = vst.msk [vmem:[%s214] sm:$0x3] %vm1029, %v1024
      %v1031 = vmul.f32 %v986, %v986
      %v1032 = vmul.f32 %v987, %v987
      %v1033 = vmul.f32 %v988, %v988
      %v1034 = vmul.f32 %v989, %v989
      %v1035 = vadd.f32 %v1031, %v1033
      %v1036 = vrot.slane %v1035, 4
      %v1037 = vadd.f32 %v1035, %v1036
      %v1038 = vrot.slane %v1037, 2
      %v1039 = vadd.f32 %v1037, %v1038
      %v1040 = vrot.slane %v1039, 1
      %v1041 = vadd.f32 %v1039, %v1040
      %v1042 = vadd.f32 %v1032, %v1034
      %v1043 = vrot.slane %v1042, 4
      %v1044 = vadd.f32 %v1042, %v1043
      %v1045 = vrot.slane %v1044, 2
      %v1046 = vadd.f32 %v1044, %v1045
      %v1047 = vrot.slane %v1046, 1
      %v1048 = vadd.f32 %v1046, %v1047
      %v1051 = vcombine.low %v1041, %v1048
      %v1053 = vunpack.c.l.s4 1966171168
      %v1054 = vunpack.c.0.s8 %v1053
      %v1055 = vlaneseq
      %v1056 = vshrl.u32 %v1055, 7
      %v1057 = vsub.s32 %v1054, %v1056
      %v1058 = vrot.slane %v1051, %v1057
      %v1060 = vunpack.c.l.s4 1966171168
      %v1061 = vunpack.c.0.s8 %v1060
      %v1062 = vlaneseq
      %v1063 = vshrl.u32 %v1062, 7
      %v1064 = vsub.s32 %v1061, %v1063
      %v1065 = vrot.slane %v1058, %v1064
      %1067 = vst.msk [vmem:[%s218] sm:$0x3] %vm1029, %v1065
      %p1068 = scmp.lt.s32.totalorder %s16, 1
      %s1069 = scalar_select %p1068, %s16, 1
      %s1070 = smul.addr %s1069, 4
      %s1071 = smul.addr %s1070, 8
      %s1072 = scalar_lea.vmem %s2, %s1071
      %p1073 = scmp.lt.s32.totalorder %s16, 1
      %s1074 = scalar_select %p1073, %s16, 1
      %s1075 = smul.addr %s1074, 2
      %s1076 = scalar_lea.vmem %s3, %s1075
      %p1077 = scmp.lt.s32.totalorder %s16, 1
      %s1078 = scalar_select %p1077, %s16, 1
      %s1079 = smul.addr %s1078, 2
      %s1080 = scalar_lea.vmem %s4, %s1079
      // Predicated region
      $region29: #{bn_residual_block_forward.4} parent=27 // pred_check
        %p1081 = pneg %p81
      $region30: #{bn_residual_block_forward.4} parent=27 // pred_check_branch
        %1083 = sbr.rel (%p1081) target = $region32
      $region31: #{bn_residual_block_forward.4} parent=27 // pred_region
        _
      $region32: #{bn_residual_block_forward.4} parent=27 // pred_fallthru
        _
      // Predicated region
      $region33: #{bn_residual_block_forward.4} parent=27 // pred_check
        %p1084 = pneg %p107
      $region34: #{bn_residual_block_forward.4} parent=27 // pred_check_branch
        %1086 = sbr.rel (%p1084) target = $region36
      $region35: #{bn_residual_block_forward.4} parent=27 // pred_region
        _
      $region36: #{bn_residual_block_forward.4} parent=27 // pred_fallthru
        _
      // Predicated region
      $region37: #{bn_residual_block_forward.4} parent=27 // pred_check
        %p1087 = pneg %p133
      $region38: #{bn_residual_block_forward.4} parent=27 // pred_check_branch
        %1089 = sbr.rel (%p1087) target = $region40
      $region39: #{bn_residual_block_forward.4} parent=27 // pred_region
        _
      $region40: #{bn_residual_block_forward.4} parent=27 // pred_fallthru
        _
    $region28: #{bn_residual_block_forward.4} parent=5 // pred_fallthru
      _
    %p1090 = scmp.le.s32.totalorder 2, %s11
    // Predicated region
    $region41: #{bn_residual_block_forward.4} parent=5 // pred_check
      %p1091 = pneg %p1090
    $region42: #{bn_residual_block_forward.4} parent=5 // pred_check_branch
      %1093 = sbr.rel (%p1091) target = $region44
    $region43: #{bn_residual_block_forward.4} parent=5 // pred_region
      %s1094 = ssub.s32 %s11, 2
      // Predicated region
      $region45: #{bn_residual_block_forward.4} parent=43 // pred_check
        %p1095 = pneg %p87
      $region46: #{bn_residual_block_forward.4} parent=43 // pred_check_branch
        %1097 = sbr.rel (%p1095) target = $region48
      $region47: #{bn_residual_block_forward.4} parent=43 // pred_region
        %p1098 = scmp.lt.s32.totalorder %s17, 1
        %s1099 = scalar_select %p1098, %s17, 1
        %s1100 = smul.addr %s1099, 4
        %s1101 = smul.addr %s1100, 8
        %s1102 = scalar_lea.vmem %s2, %s1101
      $region48: #{bn_residual_block_forward.4} parent=43 // pred_fallthru
        _
      // Predicated region
      $region49: #{bn_residual_block_forward.4} parent=43 // pred_check
        %p1103 = pneg %p113
      $region50: #{bn_residual_block_forward.4} parent=43 // pred_check_branch
        %1105 = sbr.rel (%p1103) target = $region52
      $region51: #{bn_residual_block_forward.4} parent=43 // pred_region
        %p1106 = scmp.lt.s32.totalorder %s17, 1
        %s1107 = scalar_select %p1106, %s17, 1
        %s1108 = smul.addr %s1107, 2
        %s1109 = scalar_lea.vmem %s3, %s1108
      $region52: #{bn_residual_block_forward.4} parent=43 // pred_fallthru
        _
      // Predicated region
      $region53: #{bn_residual_block_forward.4} parent=43 // pred_check
        %p1110 = pneg %p139
      $region54: #{bn_residual_block_forward.4} parent=43 // pred_check_branch
        %1112 = sbr.rel (%p1110) target = $region56
      $region55: #{bn_residual_block_forward.4} parent=43 // pred_region
        %p1113 = scmp.lt.s32.totalorder %s17, 1
        %s1114 = scalar_select %p1113, %s17, 1
        %s1115 = smul.addr %s1114, 2
        %s1116 = scalar_lea.vmem %s4, %s1115
      $region56: #{bn_residual_block_forward.4} parent=43 // pred_fallthru
        _
    $region44: #{bn_residual_block_forward.4} parent=5 // pred_fallthru
      _
  $region6: #{bn_residual_block_forward.4} parent=0 // loop_footer
    %s15 = sadd.s32 1, %s11
  $region7: #{bn_residual_block_forward.4} parent=0 // loop_footer_branch
    %10 = sbr.rel target = $region3
  $region8: #{bn_residual_block_forward.4} parent=0 // loop_exit
    _

// kernel: tile.23
$region0: #{tile.23}
  #allocation0 [shape = 's32[1]{0}', space=sflag, size = 0x4, scoped, tag = 'scoped memory for tile.23']
  %s0 = inlined_call_operand.vmem [shape: f32[16], index: 0, kind: input, shape index: {}]
  %s1 = inlined_call_operand.vmem [shape: f32[16,16], index: 1, kind: output, shape index: {}]
  // Predicated region
  $region2: #{tile.23} parent=0 // pred_check
    _
  $region3: #{tile.23} parent=0 // pred_check_branch
    %3 = sbr.rel (0) target = $region5
  $region4: #{tile.23} parent=0 // pred_region
    _
  $region5: #{tile.23} parent=0 // pred_fallthru
    _
  %v4 = vld [vmem:[%s0] ss:$0 sm:$0xff]
  %5 = vst [vmem:[%s1] sm:$0xff] %v4
  %s6 = scalar_lea.vmem %s1, 8
  %7 = vst [vmem:[%s6] sm:$0xff] %v4

// kernel: tile.24
$region0: #{tile.24}
  %s0 = inlined_call_operand.vmem [shape: f32[16,16], index: 0, kind: input, shape index: {}]
  %s1 = inlined_call_operand.vmem [shape: f32[1,256], index: 1, kind: output, shape index: {}]
  $region1: #{tile.24} parent=0
    #allocation0 [shape = 'u8[8192]{0}', space=vmem, size = 0x2000, scoped, tag = 'scoped mem for output reshape']
    %s2 = smov 3
    %v3 = vld [vmem:[%s0] ss:$8 sm:%s2]
    %vm4 = vcmask 130048
    %5 = vst.msk [vmem:[#allocation0] ss:$8 sm:$0x3] %vm4, %v3
    %s6 = scalar_lea.vmem %s0, 7
    %s7 = smov 3
    %v8 = vld [vmem:[%s6] ss:$8 sm:%s7]
    %9 = vrot.lane.b32.xlu0 %v8, 112
    %v10 = vpop.permute.xlu0 %9
    %vm11 = vcmask 1048448
    %12 = vst.msk [vmem:[#allocation0] ss:$8 sm:$0x3] %vm11, %v10
    %s13 = scalar_lea.vmem %s0, 6
    %s14 = smov 3
    %v15 = vld [vmem:[%s13] ss:$8 sm:%s14]
    %16 = vrot.lane.b32.xlu0 %v15, 96
    %v17 = vpop.permute.xlu0 %16
    %vm18 = vcmask 917248
    %19 = vst.msk [vmem:[#allocation0] ss:$8 sm:$0x3] %vm18, %v17
    %s20 = scalar_lea.vmem %s0, 5
    %s21 = smov 3
    %v22 = vld [vmem:[%s20] ss:$8 sm:%s21]
    %23 = vrot.lane.b32.xlu0 %v22, 80
    %v24 = vpop.permute.xlu0 %23
    %vm25 = vcmask 786048
    %26 = vst.msk [vmem:[#allocation0] ss:$8 sm:$0x3] %vm25, %v24
    %s27 = scalar_lea.vmem %s0, 4
    %s28 = smov 3
    %v29 = vld [vmem:[%s27] ss:$8 sm:%s28]
    %30 = vrot.lane.b32.xlu0 %v29, 64
    %v31 = vpop.permute.xlu0 %30
    %vm32 = vcmask 654848
    %33 = vst.msk [vmem:[#allocation0] ss:$8 sm:$0x3] %vm32, %v31
    %s34 = scalar_lea.vmem %s0, 3
    %s35 = smov 3
    %v36 = vld [vmem:[%s34] ss:$8 sm:%s35]
    %37 = vrot.lane.b32.xlu0 %v36, 48
    %v38 = vpop.permute.xlu0 %37
    %vm39 = vcmask 523648
    %40 = vst.msk [vmem:[#allocation0] ss:$8 sm:$0x3] %vm39, %v38
    %s41 = scalar_lea.vmem %s0, 2
    %s42 = smov 3
    %v43 = vld [vmem:[%s41] ss:$8 sm:%s42]
    %44 = vrot.lane.b32.xlu0 %v43, 32
    %v45 = vpop.permute.xlu0 %44
    %vm46 = vcmask 392448
    %47 = vst.msk [vmem:[#allocation0] ss:$8 sm:$0x3] %vm46, %v45
    %s48 = scalar_lea.vmem %s0, 1
    %s49 = smov 3
    %v50 = vld [vmem:[%s48] ss:$8 sm:%s49]
    %51 = vrot.lane.b32.xlu0 %v50, 16
    %v52 = vpop.permute.xlu0 %51
    %vm53 = vcmask 261248
    %54 = vst.msk [vmem:[#allocation0] ss:$8 sm:$0x3] %vm53, %v52
    %s56 = sshllo.u32 0, 1
    %v58 = vld [vmem:[#allocation0] sm:%s56]
    %s59 = sshllo.u32 0, 1
    %60 = vst [vmem:[%s1] sm:%s59] %v58
    %s61 = scalar_lea.vmem [#allocation0], 8
    %v62 = vld [vmem:[%s61] sm:%s56]
    %s63 = sshllo.u32 0, 1
    %s64 = scalar_lea.vmem %s1, 1
    %65 = vst [vmem:[%s64] sm:%s63] %v62

// kernel: bn_residual_block_forward.5
$region0: #{bn_residual_block_forward.5}
  #allocation0 [shape = 'u32[]', space=smem, size = 0x4, offset = 0x4, fixed_abs, tag = 'smem constant byte address 0x4 - core index']
  #allocation1 [shape = 'u32[144,128]{1,0:T(1,128)}', space=vmem, size = 0x12000, scoped, tag = 'internal scratch']
  %s0 = inlined_call_operand.vmem [shape: f32[32,256], index: 0, kind: input, shape index: {}]
  %s1 = inlined_call_operand.vmem [shape: f32[1,256], index: 1, kind: input, shape index: {}]
  %s2 = inlined_call_operand.vmem [shape: f32[1,256], index: 2, kind: input, shape index: {}]
  %s3 = inlined_call_operand.vmem [shape: f32[32,256], index: 3, kind: output, shape index: {}]
  %s4 = sld [smem:[#allocation0]]
  $region22: #{bn_residual_block_forward.5} parent=0
    _
  %s6 = ssub.s32 1, %s4
  %s7 = scalar_select 0, %s6, %s4
  // Predicated region
  $region2: #{bn_residual_block_forward.5} parent=0 // pred_check
    _
  $region3: #{bn_residual_block_forward.5} parent=0 // pred_check_branch
    %9 = sbr.rel (0) target = $region5
  $region4: #{bn_residual_block_forward.5} parent=0 // pred_region
    _
  $region5: #{bn_residual_block_forward.5} parent=0 // pred_fallthru
    _
  // Predicated region
  $region6: #{bn_residual_block_forward.5} parent=0 // pred_check
    _
  $region7: #{bn_residual_block_forward.5} parent=0 // pred_check_branch
    %11 = sbr.rel (0) target = $region9
  $region8: #{bn_residual_block_forward.5} parent=0 // pred_region
    _
  $region9: #{bn_residual_block_forward.5} parent=0 // pred_fallthru
    _
  // Predicated region
  $region10: #{bn_residual_block_forward.5} parent=0 // pred_check
    _
  $region11: #{bn_residual_block_forward.5} parent=0 // pred_check_branch
    %13 = sbr.rel (0) target = $region13
  $region12: #{bn_residual_block_forward.5} parent=0 // pred_region
    _
  $region13: #{bn_residual_block_forward.5} parent=0 // pred_fallthru
    _
  %v14 = vld [vmem:[%s0] sm:$0xff]
  %v15 = vld [vmem:[%s0 + $0x8] sm:$0xff]
  %v16 = vld [vmem:[%s0 + $0x10] sm:$0xff]
  %v17 = vld [vmem:[%s0 + $0x18] sm:$0xff]
  %v18 = vld [vmem:[%s0 + $0x20] sm:$0xff]
  %v19 = vld [vmem:[%s0 + $0x28] sm:$0xff]
  %v20 = vld [vmem:[%s0 + $0x30] sm:$0xff]
  %v21 = vld [vmem:[%s0 + $0x38] sm:$0xff]
  %v22 = vld [vmem:[%s1] sm:$0x3]
  %v24 = vlaneseq
  %v25 = vshrl.u32 %v24, 7
  %v26 = vsub.s32 0, %v25
  %v27 = vrot.slane %v22, %v26
  %v28 = vlaneseq
  %v29 = vshrl.u32 %v28, 7
  %v30 = vsub.s32 1, %v29
  %v31 = vrot.slane %v22, %v30
  %v34 = vmul.f32 %v14, %v27
  %v35 = vmul.f32 %v15, %v31
  %v36 = vmul.f32 %v16, %v27
  %v37 = vmul.f32 %v17, %v31
  %v38 = vmul.f32 %v18, %v27
  %v39 = vmul.f32 %v19, %v31
  %v40 = vmul.f32 %v20, %v27
  %v41 = vmul.f32 %v21, %v31
  %v42 = vld [vmem:[%s2] sm:$0x3]
  %v44 = vlaneseq
  %v45 = vshrl.u32 %v44, 7
  %v46 = vsub.s32 0, %v45
  %v47 = vrot.slane %v42, %v46
  %v48 = vlaneseq
  %v49 = vshrl.u32 %v48, 7
  %v50 = vsub.s32 1, %v49
  %v51 = vrot.slane %v42, %v50
  %v54 = vadd.f32 %v34, %v47
  %v55 = vadd.f32 %v35, %v51
  %v56 = vadd.f32 %v36, %v47
  %v57 = vadd.f32 %v37, %v51
  %v58 = vadd.f32 %v38, %v47
  %v59 = vadd.f32 %v39, %v51
  %v60 = vadd.f32 %v40, %v47
  %v61 = vadd.f32 %v41, %v51
  %vm62 = vcmp.gt.f32.partialorder %v54, 0.0
  %vm63 = vcmp.gt.f32.partialorder %v55, 0.0
  %vm64 = vcmp.gt.f32.partialorder %v56, 0.0
  %vm65 = vcmp.gt.f32.partialorder %v57, 0.0
  %vm66 = vcmp.gt.f32.partialorder %v58, 0.0
  %vm67 = vcmp.gt.f32.partialorder %v59, 0.0
  %vm68 = vcmp.gt.f32.partialorder %v60, 0.0
  %vm69 = vcmp.gt.f32.partialorder %v61, 0.0
  %v70 = vmul.f32 %v54, 0.01
  %v71 = vmul.f32 %v55, 0.01
  %v72 = vmul.f32 %v56, 0.01
  %v73 = vmul.f32 %v57, 0.01
  %v74 = vmul.f32 %v58, 0.01
  %v75 = vmul.f32 %v59, 0.01
  %v76 = vmul.f32 %v60, 0.01
  %v77 = vmul.f32 %v61, 0.01
  %v78 = vsel %vm62, %v54, %v70
  %v79 = vsel %vm63, %v55, %v71
  %v80 = vsel %vm64, %v56, %v72
  %v81 = vsel %vm65, %v57, %v73
  %v82 = vsel %vm66, %v58, %v74
  %v83 = vsel %vm67, %v59, %v75
  %v84 = vsel %vm68, %v60, %v76
  %v85 = vsel %vm69, %v61, %v77
  %86 = vst [vmem:[%s3] sm:$0xff] %v78
  %87 = vst [vmem:[%s3 + $0x8] sm:$0xff] %v79
  %88 = vst [vmem:[%s3 + $0x10] sm:$0xff] %v80
  %89 = vst [vmem:[%s3 + $0x18] sm:$0xff] %v81
  %90 = vst [vmem:[%s3 + $0x20] sm:$0xff] %v82
  %91 = vst [vmem:[%s3 + $0x28] sm:$0xff] %v83
  %92 = vst [vmem:[%s3 + $0x30] sm:$0xff] %v84
  %93 = vst [vmem:[%s3 + $0x38] sm:$0xff] %v85
  // Predicated region
  $region14: #{bn_residual_block_forward.5} parent=0 // pred_check
    _
  $region15: #{bn_residual_block_forward.5} parent=0 // pred_check_branch
    %95 = sbr.rel (0) target = $region17
  $region16: #{bn_residual_block_forward.5} parent=0 // pred_region
    _
  $region17: #{bn_residual_block_forward.5} parent=0 // pred_fallthru
    _
  // Predicated region
  $region18: #{bn_residual_block_forward.5} parent=0 // pred_check
    _
  $region19: #{bn_residual_block_forward.5} parent=0 // pred_check_branch
    %97 = sbr.rel (0) target = $region21
  $region20: #{bn_residual_block_forward.5} parent=0 // pred_region
    _
  $region21: #{bn_residual_block_forward.5} parent=0 // pred_fallthru
    _

// kernel: bn_residual_block_forward.7
$region0: #{bn_residual_block_forward.7}
  #allocation0 [shape = 'u32[]', space=smem, size = 0x4, offset = 0x4, fixed_abs, tag = 'smem constant byte address 0x4 - core index']
  #allocation1 [shape = 'u32[144,128]{1,0:T(1,128)}', space=vmem, size = 0x12000, scoped, tag = 'internal scratch']
  %s0 = inlined_call_operand.vmem [shape: f32[32,256], index: 0, kind: input, shape index: {}]
  %s1 = inlined_call_operand.vmem [shape: f32[1,256], index: 1, kind: input, shape index: {}]
  %s2 = inlined_call_operand.vmem [shape: f32[1,256], index: 2, kind: input, shape index: {}]
  %s3 = inlined_call_operand.vmem [shape: f32[32,256], index: 3, kind: input, shape index: {}]
  %s4 = inlined_call_operand.vmem [shape: f32[32,256], index: 4, kind: output, shape index: {}]
  %s5 = sld [smem:[#allocation0]]
  $region26: #{bn_residual_block_forward.7} parent=0
    _
  %s7 = ssub.s32 1, %s5
  %s8 = scalar_select 0, %s7, %s5
  // Predicated region
  $region2: #{bn_residual_block_forward.7} parent=0 // pred_check
    _
  $region3: #{bn_residual_block_forward.7} parent=0 // pred_check_branch
    %10 = sbr.rel (0) target = $region5
  $region4: #{bn_residual_block_forward.7} parent=0 // pred_region
    _
  $region5: #{bn_residual_block_forward.7} parent=0 // pred_fallthru
    _
  // Predicated region
  $region6: #{bn_residual_block_forward.7} parent=0 // pred_check
    _
  $region7: #{bn_residual_block_forward.7} parent=0 // pred_check_branch
    %12 = sbr.rel (0) target = $region9
  $region8: #{bn_residual_block_forward.7} parent=0 // pred_region
    _
  $region9: #{bn_residual_block_forward.7} parent=0 // pred_fallthru
    _
  // Predicated region
  $region10: #{bn_residual_block_forward.7} parent=0 // pred_check
    _
  $region11: #{bn_residual_block_forward.7} parent=0 // pred_check_branch
    %14 = sbr.rel (0) target = $region13
  $region12: #{bn_residual_block_forward.7} parent=0 // pred_region
    _
  $region13: #{bn_residual_block_forward.7} parent=0 // pred_fallthru
    _
  // Predicated region
  $region14: #{bn_residual_block_forward.7} parent=0 // pred_check
    _
  $region15: #{bn_residual_block_forward.7} parent=0 // pred_check_branch
    %16 = sbr.rel (0) target = $region17
  $region16: #{bn_residual_block_forward.7} parent=0 // pred_region
    _
  $region17: #{bn_residual_block_forward.7} parent=0 // pred_fallthru
    _
  %v17 = vld [vmem:[%s0] sm:$0xff]
  %v18 = vld [vmem:[%s0 + $0x8] sm:$0xff]
  %v19 = vld [vmem:[%s0 + $0x10] sm:$0xff]
  %v20 = vld [vmem:[%s0 + $0x18] sm:$0xff]
  %v21 = vld [vmem:[%s0 + $0x20] sm:$0xff]
  %v22 = vld [vmem:[%s0 + $0x28] sm:$0xff]
  %v23 = vld [vmem:[%s0 + $0x30] sm:$0xff]
  %v24 = vld [vmem:[%s0 + $0x38] sm:$0xff]
  %v25 = vld [vmem:[%s1] sm:$0x3]
  %v27 = vlaneseq
  %v28 = vshrl.u32 %v27, 7
  %v29 = vsub.s32 0, %v28
  %v30 = vrot.slane %v25, %v29
  %v31 = vlaneseq
  %v32 = vshrl.u32 %v31, 7
  %v33 = vsub.s32 1, %v32
  %v34 = vrot.slane %v25, %v33
  %v37 = vmul.f32 %v17, %v30
  %v38 = vmul.f32 %v18, %v34
  %v39 = vmul.f32 %v19, %v30
  %v40 = vmul.f32 %v20, %v34
  %v41 = vmul.f32 %v21, %v30
  %v42 = vmul.f32 %v22, %v34
  %v43 = vmul.f32 %v23, %v30
  %v44 = vmul.f32 %v24, %v34
  %v45 = vld [vmem:[%s2] sm:$0x3]
  %v47 = vlaneseq
  %v48 = vshrl.u32 %v47, 7
  %v49 = vsub.s32 0, %v48
  %v50 = vrot.slane %v45, %v49
  %v51 = vlaneseq
  %v52 = vshrl.u32 %v51, 7
  %v53 = vsub.s32 1, %v52
  %v54 = vrot.slane %v45, %v53
  %v57 = vadd.f32 %v37, %v50
  %v58 = vadd.f32 %v38, %v54
  %v59 = vadd.f32 %v39, %v50
  %v60 = vadd.f32 %v40, %v54
  %v61 = vadd.f32 %v41, %v50
  %v62 = vadd.f32 %v42, %v54
  %v63 = vadd.f32 %v43, %v50
  %v64 = vadd.f32 %v44, %v54
  %v65 = vld [vmem:[%s3] sm:$0xff]
  %v66 = vld [vmem:[%s3 + $0x8] sm:$0xff]
  %v67 = vld [vmem:[%s3 + $0x10] sm:$0xff]
  %v68 = vld [vmem:[%s3 + $0x18] sm:$0xff]
  %v69 = vld [vmem:[%s3 + $0x20] sm:$0xff]
  %v70 = vld [vmem:[%s3 + $0x28] sm:$0xff]
  %v71 = vld [vmem:[%s3 + $0x30] sm:$0xff]
  %v72 = vld [vmem:[%s3 + $0x38] sm:$0xff]
  %v73 = vadd.f32 %v57, %v65
  %v74 = vadd.f32 %v58, %v66
  %v75 = vadd.f32 %v59, %v67
  %v76 = vadd.f32 %v60, %v68
  %v77 = vadd.f32 %v61, %v69
  %v78 = vadd.f32 %v62, %v70
  %v79 = vadd.f32 %v63, %v71
  %v80 = vadd.f32 %v64, %v72
  %vm81 = vcmp.gt.f32.partialorder %v73, 0.0
  %vm82 = vcmp.gt.f32.partialorder %v74, 0.0
  %vm83 = vcmp.gt.f32.partialorder %v75, 0.0
  %vm84 = vcmp.gt.f32.partialorder %v76, 0.0
  %vm85 = vcmp.gt.f32.partialorder %v77, 0.0
  %vm86 = vcmp.gt.f32.partialorder %v78, 0.0
  %vm87 = vcmp.gt.f32.partialorder %v79, 0.0
  %vm88 = vcmp.gt.f32.partialorder %v80, 0.0
  %v89 = vmul.f32 %v73, 0.01
  %v90 = vmul.f32 %v74, 0.01
  %v91 = vmul.f32 %v75, 0.01
  %v92 = vmul.f32 %v76, 0.01
  %v93 = vmul.f32 %v77, 0.01
  %v94 = vmul.f32 %v78, 0.01
  %v95 = vmul.f32 %v79, 0.01
  %v96 = vmul.f32 %v80, 0.01
  %v97 = vsel %vm81, %v73, %v89
  %v98 = vsel %vm82, %v74, %v90
  %v99 = vsel %vm83, %v75, %v91
  %v100 = vsel %vm84, %v76, %v92
  %v101 = vsel %vm85, %v77, %v93
  %v102 = vsel %vm86, %v78, %v94
  %v103 = vsel %vm87, %v79, %v95
  %v104 = vsel %vm88, %v80, %v96
  %105 = vst [vmem:[%s4] sm:$0xff] %v97
  %106 = vst [vmem:[%s4 + $0x8] sm:$0xff] %v98
  %107 = vst [vmem:[%s4 + $0x10] sm:$0xff] %v99
  %108 = vst [vmem:[%s4 + $0x18] sm:$0xff] %v100
  %109 = vst [vmem:[%s4 + $0x20] sm:$0xff] %v101
  %110 = vst [vmem:[%s4 + $0x28] sm:$0xff] %v102
  %111 = vst [vmem:[%s4 + $0x30] sm:$0xff] %v103
  %112 = vst [vmem:[%s4 + $0x38] sm:$0xff] %v104
  // Predicated region
  $region18: #{bn_residual_block_forward.7} parent=0 // pred_check
    _
  $region19: #{bn_residual_block_forward.7} parent=0 // pred_check_branch
    %114 = sbr.rel (0) target = $region21
  $region20: #{bn_residual_block_forward.7} parent=0 // pred_region
    _
  $region21: #{bn_residual_block_forward.7} parent=0 // pred_fallthru
    _
  // Predicated region
  $region22: #{bn_residual_block_forward.7} parent=0 // pred_check
    _
  $region23: #{bn_residual_block_forward.7} parent=0 // pred_check_branch
    %116 = sbr.rel (0) target = $region25
  $region24: #{bn_residual_block_forward.7} parent=0 // pred_region
    _
  $region25: #{bn_residual_block_forward.7} parent=0 // pred_fallthru
    _

</llo_original>
